<compile_context>
chip_gen: v7x
topology: tpu7x:2x2x1
jax: 0.10.0
libtpu: 0.0.40
codegen_flags: <defaults>
</compile_context>

<pallas_src>
import functools

import jax
import jax.numpy as jnp
import numpy as np
from jax.experimental import pallas as pl
from jax.experimental.pallas import tpu as pltpu


# ----------------------------------------------------------------------------
# Helpers
# ----------------------------------------------------------------------------
_LANE = 128
_SUBLANE = 8


def _round_up(n, m):
    return ((n + m - 1) // m) * m


def _const_full_spec(arr):
    """Full-array block, same block every grid step (weights stay VMEM-resident)."""
    nd = arr.ndim
    return pl.BlockSpec(arr.shape, lambda b, _nd=nd: (0,) * _nd)


# ----------------------------------------------------------------------------
# Fused Pallas kernel: all TemporalBlocks + final fc for one graph per grid step
# ----------------------------------------------------------------------------
def make_fused_tcn_kernel(kernel_size, dilations, has_downsample, last_t):
    """Build the fused kernel.

    kernel_size / dilations / has_downsample / last_t are static Python values,
    so the whole block stack unrolls into one straight-line MXU/VPU program.
    """
    num_levels = len(dilations)

    def kernel(*refs):
        it = iter(refs)
        x_ref = next(it)                       # (1, T_pad, Cin_p)
        levels = []
        for i in range(num_levels):
            w1, b1, w2, b2 = next(it), next(it), next(it), next(it)
            wd = bd = None
            if has_downsample[i]:
                wd, bd = next(it), next(it)
            levels.append((w1, b1, w2, b2, wd, bd))
        fc_w = next(it)                        # (H_p, Out_p)
        fc_b = next(it)                        # (1, Out_p)
        o_ref = next(it)                       # (1, 1, Out_p)

        y = x_ref[0].astype(jnp.float32)       # (T_pad, Cin_p)
        T = y.shape[0]

        def causal_conv(h, wcol_ref, bias_ref, d):
            # im2col: pad time axis once, slice K taps, concat on the lane axis
            # (each tap slice is already 128-lane aligned), then a single
            # (T, K*C) x (K*C, H) matmul on the MXU.
            pad = (kernel_size - 1) * d
            C = h.shape[-1]
            if pad > 0:
                hp = jnp.concatenate([jnp.zeros((pad, C), h.dtype), h], axis=0)
            else:
                hp = h
            col = jnp.concatenate(
                [hp[j * d: j * d + T, :] for j in range(kernel_size)], axis=-1)
            out = jax.lax.dot_general(
                col, wcol_ref[...],
                dimension_numbers=(((1,), (0,)), ((), ())),
                preferred_element_type=jnp.float32)
            return out + bias_ref[...]          # (1, H) bias broadcasts over T

        for i, (w1, b1, w2, b2, wd, bd) in enumerate(levels):
            d = dilations[i]
            h1 = jnp.maximum(causal_conv(y, w1, b1, d), 0.0)
            h2 = jnp.maximum(causal_conv(h1, w2, b2, d), 0.0)
            if wd is not None:                  # 1x1-conv downsample residual
                res = jax.lax.dot_general(
                    y, wd[...],
                    dimension_numbers=(((1,), (0,)), ((), ())),
                    preferred_element_type=jnp.float32) + bd[...]
            else:
                res = y
            y = jnp.maximum(h2 + res, 0.0)

        # Final fc on the LAST TRUE time step (static index), fused so the
        # (B, T, H) activation tensor never hits HBM.
        y_last = y[last_t:last_t + 1, :]                        # (1, H_p)
        o_ref[0] = (jnp.dot(y_last, fc_w[...],
                            preferred_element_type=jnp.float32)
                    + fc_b[...])

    return kernel


# ----------------------------------------------------------------------------
# Parameter setup / padding (hoisted out of the per-call path)
# ----------------------------------------------------------------------------
def init_tcn_params(key, in_channels, hidden_dim, prediction_horizon,
                    num_levels=2, kernel_size=3, scale=0.1):
    out_dim = prediction_horizon * 3
    params = {"blocks": []}
    keys = jax.random.split(key, num_levels * 6 + 2)
    ki = 0

    def nrm(shape):
        nonlocal ki
        v = scale * jax.random.normal(keys[ki], shape, dtype=jnp.float32)
        ki += 1
        return v

    for i in range(num_levels):
        in_ch = in_channels if i == 0 else hidden_dim
        blk = {
            # PyTorch conv weight is (out, in, K); stored here as (K, in, out).
            "w1": nrm((kernel_size, in_ch, hidden_dim)),
            "b1": nrm((1, hidden_dim)),
            "w2": nrm((kernel_size, hidden_dim, hidden_dim)),
            "b2": nrm((1, hidden_dim)),
        }
        if in_ch != hidden_dim:  # downsample = Conv1d(in_ch, hidden, 1)
            blk["wd"] = nrm((in_ch, hidden_dim))
            blk["bd"] = nrm((1, hidden_dim))
        params["blocks"].append(blk)

    # PyTorch Linear weight is (out_dim, hidden); stored here transposed.
    params["fc_w"] = nrm((hidden_dim, out_dim))
    params["fc_b"] = nrm((1, out_dim))
    return params


def prepare_padded_params(params):
    """Zero-pad channel dims to 128-lane multiples and flatten conv weights to
    im2col (K*Cin_p, H_p) layout.  Done once, outside the jitted forward."""
    prepared = {"blocks": []}
    for blk in params["blocks"]:
        K, cin, h = blk["w1"].shape
        cin_p, h_p = _round_up(cin, _LANE), _round_up(h, _LANE)
        p = {
            "w1": jnp.pad(blk["w1"], ((0, 0), (0, cin_p - cin), (0, h_p - h))
                          ).reshape(K * cin_p, h_p),
            "b1": jnp.pad(blk["b1"], ((0, 0), (0, h_p - h))),
            "w2": jnp.pad(blk["w2"], ((0, 0), (0, h_p - h), (0, h_p - h))
                          ).reshape(K * h_p, h_p),
            "b2": jnp.pad(blk["b2"], ((0, 0), (0, h_p - h))),
        }
        if "wd" in blk:
            p["wd"] = jnp.pad(blk["wd"], ((0, cin_p - cin), (0, h_p - h)))
            p["bd"] = jnp.pad(blk["bd"], ((0, 0), (0, h_p - h)))
        prepared["blocks"].append(p)

    h, out_dim = params["fc_w"].shape
    h_p, out_p = _round_up(h, _LANE), _round_up(out_dim, _LANE)
    prepared["fc_w"] = jnp.pad(params["fc_w"], ((0, h_p - h), (0, out_p - out_dim)))
    prepared["fc_b"] = jnp.pad(params["fc_b"], ((0, 0), (0, out_p - out_dim)))
    return prepared


def gather_embeddings_by_time(x, batch, node_time, num_graphs, seq_len):
    C = x.shape[1]
    x_seq = jnp.zeros((num_graphs, seq_len, C), x.dtype)
    return x_seq.at[batch, node_time].set(x)


# ----------------------------------------------------------------------------
# Forward pass: gather (plain JAX) + ONE fused pallas_call
# ----------------------------------------------------------------------------
def tcn_forward(pparams, x, edge_index, batch, node_time,
                num_graphs, seq_len, kernel_size=3, out_dim=6):
    del edge_index  # unused by the reference forward
    B, T = num_graphs, seq_len
    T_pad = _round_up(T, _SUBLANE)   # sublane-aligned activation block

    # Gather node features, then pad channels (lane) and time (sublane).
    cin = x.shape[1]
    cin_p = _round_up(cin, _LANE)
    x_p = jnp.pad(x, ((0, 0), (0, cin_p - cin)))
    x_seq = gather_embeddings_by_time(x_p, batch, node_time, B, T)   # (B, T, Cin_p)
    if T_pad != T:
        # Trailing zero time steps never influence earlier (causal) outputs.
        x_seq = jnp.pad(x_seq, ((0, 0), (0, T_pad - T), (0, 0)))

    blocks = pparams["blocks"]
    dilations = tuple(2 ** i for i in range(len(blocks)))
    has_ds = tuple("wd" in blk for blk in blocks)
    out_p = pparams["fc_w"].shape[1]

    args = [x_seq]
    in_specs = [pl.BlockSpec((1, T_pad, cin_p), lambda b: (b, 0, 0))]
    for blk in blocks:
        for name in ("w1", "b1", "w2", "b2", "wd", "bd"):
            if name in blk:
                args.append(blk[name])
                in_specs.append(_const_full_spec(blk[name]))
    for name in ("fc_w", "fc_b"):
        args.append(pparams[name])
        in_specs.append(_const_full_spec(pparams[name]))

    out = pl.pallas_call(
        make_fused_tcn_kernel(kernel_size, dilations, has_ds, last_t=T - 1),
        grid=(B,),
        out_shape=jax.ShapeDtypeStruct((B, 1, out_p), jnp.float32),
        in_specs=in_specs,
        out_specs=pl.BlockSpec((1, 1, out_p), lambda b: (b, 0, 0)),
        compiler_params=pltpu.CompilerParams(
            dimension_semantics=("parallel",)),   # shard graphs across v7x's 2 TCs
    )(*args)

    return out.reshape(B, out_p)[:, :out_dim]


# ----------------------------------------------------------------------------
# Pure-JAX reference (same math, no Pallas, unpadded) for a correctness check
# ----------------------------------------------------------------------------
def _ref_causal_conv(x, w, b, dilation):
    K = w.shape[0]
    B, T, _ = x.shape
    acc = jnp.zeros((B, T, w.shape[-1]), jnp.float32)
    for j in range(K):
        s = (K - 1 - j) * dilation
        xs = jnp.pad(x, ((0, 0), (s, 0), (0, 0)))[:, :T, :]
        acc = acc + jnp.einsum("btc,ch->bth", xs, w[j])
    return acc + b[None, :, :]


def tcn_forward_ref(params, x, edge_index, batch, node_time,
                    num_graphs, seq_len, kernel_size=3):
    del edge_index
    y = gather_embeddings_by_time(x, batch, node_time, num_graphs, seq_len)
    for i, blk in enumerate(params["blocks"]):
        d = 2 ** i
        h1 = jnp.maximum(_ref_causal_conv(y, blk["w1"], blk["b1"], d), 0.0)
        h2 = jnp.maximum(_ref_causal_conv(h1, blk["w2"], blk["b2"], d), 0.0)
        res = (jnp.einsum("btc,ch->bth", y, blk["wd"]) + blk["bd"][None, :, :]
               if "wd" in blk else y)
        y = jnp.maximum(h2 + res, 0.0)
    return y[:, -1, :] @ params["fc_w"] + params["fc_b"]


# ----------------------------------------------------------------------------
if __name__ == "__main__":
    # Small, module-consistent shapes.
    num_graphs = 2          # batch of graphs
    seq_len = 8             # time steps per graph
    in_channels = 4
    hidden_dim = 32
    prediction_horizon = 2  # -> out_dim = 6
    kernel_size = 3
    num_levels = 2

    key = jax.random.PRNGKey(0)
    k_param, k_x = jax.random.split(key)

    params = init_tcn_params(
        k_param, in_channels, hidden_dim, prediction_horizon,
        num_levels=num_levels, kernel_size=kernel_size)
    pparams = prepare_padded_params(params)   # padding hoisted, done once

    num_nodes = num_graphs * seq_len
    x = jax.random.normal(k_x, (num_nodes, in_channels), dtype=jnp.float32)
    batch = jnp.repeat(jnp.arange(num_graphs, dtype=jnp.int32), seq_len)
    node_time = jnp.tile(jnp.arange(seq_len, dtype=jnp.int32), num_graphs)
    edge_index = jnp.zeros((2, 4), dtype=jnp.int32)  # unused by forward

    fwd = jax.jit(functools.partial(
        tcn_forward, num_graphs=num_graphs, seq_len=seq_len,
        kernel_size=kernel_size, out_dim=prediction_horizon * 3))
    out = jax.block_until_ready(fwd(pparams, x, edge_index, batch, node_time))

    assert out.shape == (num_graphs, prediction_horizon * 3)

    ref = tcn_forward_ref(params, x, edge_index, batch, node_time,
                          num_graphs, seq_len, kernel_size)
    np.testing.assert_allclose(np.asarray(out), np.asarray(ref),
                               rtol=1e-4, atol=1e-4)

    print("KERNEL_OK")
</pallas_src>

<mosaic_0001>
module attributes {stable_mosaic.version = 11 : i64} {
  func.func @kernel(%arg0: i32, %arg1: memref<1x8x128xf32, #tpu.memory_space<vmem>>, %arg2: memref<384x128xf32, #tpu.memory_space<vmem>>, %arg3: memref<1x128xf32, #tpu.memory_space<vmem>>, %arg4: memref<384x128xf32, #tpu.memory_space<vmem>>, %arg5: memref<1x128xf32, #tpu.memory_space<vmem>>, %arg6: memref<128x128xf32, #tpu.memory_space<vmem>>, %arg7: memref<1x128xf32, #tpu.memory_space<vmem>>, %arg8: memref<384x128xf32, #tpu.memory_space<vmem>>, %arg9: memref<1x128xf32, #tpu.memory_space<vmem>>, %arg10: memref<384x128xf32, #tpu.memory_space<vmem>>, %arg11: memref<1x128xf32, #tpu.memory_space<vmem>>, %arg12: memref<128x128xf32, #tpu.memory_space<vmem>>, %arg13: memref<1x128xf32, #tpu.memory_space<vmem>>, %arg14: memref<1x1x128xf32, #tpu.memory_space<vmem>>) attributes {dimension_semantics = [#tpu.dimension_semantics<parallel>], iteration_bounds = array<i64: 2>, scalar_prefetch = 0 : i64, scratch_operands = 0 : i64, tpu.core_type = #tpu.core_type<tc>, window_params = [{transform_indices = @transform_0, window_bounds = array<i64: 1, 8, 128>}, {pipeline_mode = #tpu.pipeline_mode<synchronous>, transform_indices = @transform_1, window_bounds = array<i64: 384, 128>}, {pipeline_mode = #tpu.pipeline_mode<synchronous>, transform_indices = @transform_2, window_bounds = array<i64: 1, 128>}, {pipeline_mode = #tpu.pipeline_mode<synchronous>, transform_indices = @transform_3, window_bounds = array<i64: 384, 128>}, {pipeline_mode = #tpu.pipeline_mode<synchronous>, transform_indices = @transform_4, window_bounds = array<i64: 1, 128>}, {pipeline_mode = #tpu.pipeline_mode<synchronous>, transform_indices = @transform_5, window_bounds = array<i64: 128, 128>}, {pipeline_mode = #tpu.pipeline_mode<synchronous>, transform_indices = @transform_6, window_bounds = array<i64: 1, 128>}, {pipeline_mode = #tpu.pipeline_mode<synchronous>, transform_indices = @transform_7, window_bounds = array<i64: 384, 128>}, {pipeline_mode = #tpu.pipeline_mode<synchronous>, transform_indices = @transform_8, window_bounds = array<i64: 1, 128>}, {pipeline_mode = #tpu.pipeline_mode<synchronous>, transform_indices = @transform_9, window_bounds = array<i64: 384, 128>}, {pipeline_mode = #tpu.pipeline_mode<synchronous>, transform_indices = @transform_10, window_bounds = array<i64: 1, 128>}, {pipeline_mode = #tpu.pipeline_mode<synchronous>, transform_indices = @transform_11, window_bounds = array<i64: 128, 128>}, {pipeline_mode = #tpu.pipeline_mode<synchronous>, transform_indices = @transform_12, window_bounds = array<i64: 1, 128>}, {transform_indices = @transform_13, window_bounds = array<i64: 1, 1, 128>}]} {
    %c0 = arith.constant 0 : index
    %c0_0 = arith.constant 0 : index
    %c0_1 = arith.constant 0 : index
    %0 = vector.load %arg1[%c0, %c0_0, %c0_1] : memref<1x8x128xf32, #tpu.memory_space<vmem>>, vector<1x8x128xf32>
    %1 = vector.shape_cast %0 : vector<1x8x128xf32> to vector<8x128xf32>
    %cst = arith.constant 0.000000e+00 : f32
    %2 = vector.broadcast %cst : f32 to vector<2x128xf32>
    %3 = tpu.concatenate %2, %1 in 0 : vector<2x128xf32>, vector<8x128xf32> -> vector<10x128xf32>
    %4 = vector.extract_strided_slice %3 {offsets = [0, 0], sizes = [8, 128], strides = [1, 1]} : vector<10x128xf32> to vector<8x128xf32>
    %5 = vector.extract_strided_slice %3 {offsets = [1, 0], sizes = [8, 128], strides = [1, 1]} : vector<10x128xf32> to vector<8x128xf32>
    %6 = vector.extract_strided_slice %3 {offsets = [2, 0], sizes = [8, 128], strides = [1, 1]} : vector<10x128xf32> to vector<8x128xf32>
    %7 = tpu.concatenate %4, %5, %6 in 1 : vector<8x128xf32>, vector<8x128xf32>, vector<8x128xf32> -> vector<8x384xf32>
    %c0_2 = arith.constant 0 : index
    %c0_3 = arith.constant 0 : index
    %8 = vector.load %arg2[%c0_2, %c0_3] : memref<384x128xf32, #tpu.memory_space<vmem>>, vector<384x128xf32>
    %cst_4 = arith.constant dense<0.000000e+00> : vector<8x128xf32>
    %9 = tpu.matmul %7, %8, %cst_4 {dimension_numbers = #tpu.dot_dimension_numbers<[1], [0], [0], [1], [0, 0, 1, 1], [], []>} : vector<8x384xf32>, vector<384x128xf32>, vector<8x128xf32> -> vector<8x128xf32>
    %c0_5 = arith.constant 0 : index
    %c0_6 = arith.constant 0 : index
    %10 = vector.load %arg3[%c0_5, %c0_6] : memref<1x128xf32, #tpu.memory_space<vmem>>, vector<1x128xf32>
    %11 = vector.broadcast %10 : vector<1x128xf32> to vector<8x128xf32>
    %12 = arith.addf %9, %11 : vector<8x128xf32>
    %cst_7 = arith.constant 0.000000e+00 : f32
    %13 = vector.broadcast %cst_7 : f32 to vector<8x128xf32>
    %14 = arith.maximumf %12, %13 : vector<8x128xf32>
    %cst_8 = arith.constant 0.000000e+00 : f32
    %15 = vector.broadcast %cst_8 : f32 to vector<2x128xf32>
    %16 = tpu.concatenate %15, %14 in 0 : vector<2x128xf32>, vector<8x128xf32> -> vector<10x128xf32>
    %17 = vector.extract_strided_slice %16 {offsets = [0, 0], sizes = [8, 128], strides = [1, 1]} : vector<10x128xf32> to vector<8x128xf32>
    %18 = vector.extract_strided_slice %16 {offsets = [1, 0], sizes = [8, 128], strides = [1, 1]} : vector<10x128xf32> to vector<8x128xf32>
    %19 = vector.extract_strided_slice %16 {offsets = [2, 0], sizes = [8, 128], strides = [1, 1]} : vector<10x128xf32> to vector<8x128xf32>
    %20 = tpu.concatenate %17, %18, %19 in 1 : vector<8x128xf32>, vector<8x128xf32>, vector<8x128xf32> -> vector<8x384xf32>
    %c0_9 = arith.constant 0 : index
    %c0_10 = arith.constant 0 : index
    %21 = vector.load %arg4[%c0_9, %c0_10] : memref<384x128xf32, #tpu.memory_space<vmem>>, vector<384x128xf32>
    %cst_11 = arith.constant dense<0.000000e+00> : vector<8x128xf32>
    %22 = tpu.matmul %20, %21, %cst_11 {dimension_numbers = #tpu.dot_dimension_numbers<[1], [0], [0], [1], [0, 0, 1, 1], [], []>} : vector<8x384xf32>, vector<384x128xf32>, vector<8x128xf32> -> vector<8x128xf32>
    %c0_12 = arith.constant 0 : index
    %c0_13 = arith.constant 0 : index
    %23 = vector.load %arg5[%c0_12, %c0_13] : memref<1x128xf32, #tpu.memory_space<vmem>>, vector<1x128xf32>
    %24 = vector.broadcast %23 : vector<1x128xf32> to vector<8x128xf32>
    %25 = arith.addf %22, %24 : vector<8x128xf32>
    %cst_14 = arith.constant 0.000000e+00 : f32
    %26 = vector.broadcast %cst_14 : f32 to vector<8x128xf32>
    %27 = arith.maximumf %25, %26 : vector<8x128xf32>
    %c0_15 = arith.constant 0 : index
    %c0_16 = arith.constant 0 : index
    %28 = vector.load %arg6[%c0_15, %c0_16] : memref<128x128xf32, #tpu.memory_space<vmem>>, vector<128x128xf32>
    %cst_17 = arith.constant dense<0.000000e+00> : vector<8x128xf32>
    %29 = tpu.matmul %1, %28, %cst_17 {dimension_numbers = #tpu.dot_dimension_numbers<[1], [0], [0], [1], [0, 0, 1, 1], [], []>} : vector<8x128xf32>, vector<128x128xf32>, vector<8x128xf32> -> vector<8x128xf32>
    %c0_18 = arith.constant 0 : index
    %c0_19 = arith.constant 0 : index
    %30 = vector.load %arg7[%c0_18, %c0_19] : memref<1x128xf32, #tpu.memory_space<vmem>>, vector<1x128xf32>
    %31 = vector.broadcast %30 : vector<1x128xf32> to vector<8x128xf32>
    %32 = arith.addf %29, %31 : vector<8x128xf32>
    %33 = arith.addf %27, %32 : vector<8x128xf32>
    %cst_20 = arith.constant 0.000000e+00 : f32
    %34 = vector.broadcast %cst_20 : f32 to vector<8x128xf32>
    %35 = arith.maximumf %33, %34 : vector<8x128xf32>
    %cst_21 = arith.constant 0.000000e+00 : f32
    %36 = vector.broadcast %cst_21 : f32 to vector<4x128xf32>
    %37 = tpu.concatenate %36, %35 in 0 : vector<4x128xf32>, vector<8x128xf32> -> vector<12x128xf32>
    %38 = vector.extract_strided_slice %37 {offsets = [0, 0], sizes = [8, 128], strides = [1, 1]} : vector<12x128xf32> to vector<8x128xf32>
    %39 = vector.extract_strided_slice %37 {offsets = [2, 0], sizes = [8, 128], strides = [1, 1]} : vector<12x128xf32> to vector<8x128xf32>
    %40 = vector.extract_strided_slice %37 {offsets = [4, 0], sizes = [8, 128], strides = [1, 1]} : vector<12x128xf32> to vector<8x128xf32>
    %41 = tpu.concatenate %38, %39, %40 in 1 : vector<8x128xf32>, vector<8x128xf32>, vector<8x128xf32> -> vector<8x384xf32>
    %c0_22 = arith.constant 0 : index
    %c0_23 = arith.constant 0 : index
    %42 = vector.load %arg8[%c0_22, %c0_23] : memref<384x128xf32, #tpu.memory_space<vmem>>, vector<384x128xf32>
    %cst_24 = arith.constant dense<0.000000e+00> : vector<8x128xf32>
    %43 = tpu.matmul %41, %42, %cst_24 {dimension_numbers = #tpu.dot_dimension_numbers<[1], [0], [0], [1], [0, 0, 1, 1], [], []>} : vector<8x384xf32>, vector<384x128xf32>, vector<8x128xf32> -> vector<8x128xf32>
    %c0_25 = arith.constant 0 : index
    %c0_26 = arith.constant 0 : index
    %44 = vector.load %arg9[%c0_25, %c0_26] : memref<1x128xf32, #tpu.memory_space<vmem>>, vector<1x128xf32>
    %45 = vector.broadcast %44 : vector<1x128xf32> to vector<8x128xf32>
    %46 = arith.addf %43, %45 : vector<8x128xf32>
    %cst_27 = arith.constant 0.000000e+00 : f32
    %47 = vector.broadcast %cst_27 : f32 to vector<8x128xf32>
    %48 = arith.maximumf %46, %47 : vector<8x128xf32>
    %cst_28 = arith.constant 0.000000e+00 : f32
    %49 = vector.broadcast %cst_28 : f32 to vector<4x128xf32>
    %50 = tpu.concatenate %49, %48 in 0 : vector<4x128xf32>, vector<8x128xf32> -> vector<12x128xf32>
    %51 = vector.extract_strided_slice %50 {offsets = [0, 0], sizes = [8, 128], strides = [1, 1]} : vector<12x128xf32> to vector<8x128xf32>
    %52 = vector.extract_strided_slice %50 {offsets = [2, 0], sizes = [8, 128], strides = [1, 1]} : vector<12x128xf32> to vector<8x128xf32>
    %53 = vector.extract_strided_slice %50 {offsets = [4, 0], sizes = [8, 128], strides = [1, 1]} : vector<12x128xf32> to vector<8x128xf32>
    %54 = tpu.concatenate %51, %52, %53 in 1 : vector<8x128xf32>, vector<8x128xf32>, vector<8x128xf32> -> vector<8x384xf32>
    %c0_29 = arith.constant 0 : index
    %c0_30 = arith.constant 0 : index
    %55 = vector.load %arg10[%c0_29, %c0_30] : memref<384x128xf32, #tpu.memory_space<vmem>>, vector<384x128xf32>
    %cst_31 = arith.constant dense<0.000000e+00> : vector<8x128xf32>
    %56 = tpu.matmul %54, %55, %cst_31 {dimension_numbers = #tpu.dot_dimension_numbers<[1], [0], [0], [1], [0, 0, 1, 1], [], []>} : vector<8x384xf32>, vector<384x128xf32>, vector<8x128xf32> -> vector<8x128xf32>
    %c0_32 = arith.constant 0 : index
    %c0_33 = arith.constant 0 : index
    %57 = vector.load %arg11[%c0_32, %c0_33] : memref<1x128xf32, #tpu.memory_space<vmem>>, vector<1x128xf32>
    %58 = vector.broadcast %57 : vector<1x128xf32> to vector<8x128xf32>
    %59 = arith.addf %56, %58 : vector<8x128xf32>
    %cst_34 = arith.constant 0.000000e+00 : f32
    %60 = vector.broadcast %cst_34 : f32 to vector<8x128xf32>
    %61 = arith.maximumf %59, %60 : vector<8x128xf32>
    %62 = arith.addf %61, %35 : vector<8x128xf32>
    %cst_35 = arith.constant 0.000000e+00 : f32
    %63 = vector.broadcast %cst_35 : f32 to vector<8x128xf32>
    %64 = arith.maximumf %62, %63 : vector<8x128xf32>
    %65 = vector.extract_strided_slice %64 {offsets = [7, 0], sizes = [1, 128], strides = [1, 1]} : vector<8x128xf32> to vector<1x128xf32>
    %c0_36 = arith.constant 0 : index
    %c0_37 = arith.constant 0 : index
    %66 = vector.load %arg12[%c0_36, %c0_37] : memref<128x128xf32, #tpu.memory_space<vmem>>, vector<128x128xf32>
    %cst_38 = arith.constant dense<0.000000e+00> : vector<1x128xf32>
    %67 = tpu.matmul %65, %66, %cst_38 {dimension_numbers = #tpu.dot_dimension_numbers<[1], [0], [0], [1], [0, 0, 1, 1], [], []>} : vector<1x128xf32>, vector<128x128xf32>, vector<1x128xf32> -> vector<1x128xf32>
    %c0_39 = arith.constant 0 : index
    %c0_40 = arith.constant 0 : index
    %68 = vector.load %arg13[%c0_39, %c0_40] : memref<1x128xf32, #tpu.memory_space<vmem>>, vector<1x128xf32>
    %69 = arith.addf %67, %68 : vector<1x128xf32>
    %c0_41 = arith.constant 0 : index
    %c0_42 = arith.constant 0 : index
    %c0_43 = arith.constant 0 : index
    %70 = vector.load %arg14[%c0_41, %c0_42, %c0_43] : memref<1x1x128xf32, #tpu.memory_space<vmem>>, vector<1x1x128xf32>
    %71 = vector.shape_cast %70 : vector<1x1x128xf32> to vector<1x128xf32>
    %72 = vector.shape_cast %69 : vector<1x128xf32> to vector<1x1x128xf32>
    tpu.vector_store %arg14[%c0_41, %c0_42, %c0_43], %72 {strides = array<i32>} : memref<1x1x128xf32, #tpu.memory_space<vmem>>, vector<1x1x128xf32>,
    return
  }
  func.func @transform_0(%arg0: i32) -> (i32, i32, i32) {
    %c0_i32 = arith.constant 0 : i32
    %c0_i32_0 = arith.constant 0 : i32
    %c0_i32_1 = arith.constant 0 : i32
    return %arg0, %c0_i32, %c0_i32_0 : i32, i32, i32
  }
  func.func @transform_1(%arg0: i32) -> (i32, i32) {
    %c0_i32 = arith.constant 0 : i32
    %c0_i32_0 = arith.constant 0 : i32
    %c0_i32_1 = arith.constant 0 : i32
    return %c0_i32, %c0_i32_0 : i32, i32
  }
  func.func @transform_2(%arg0: i32) -> (i32, i32) {
    %c0_i32 = arith.constant 0 : i32
    %c0_i32_0 = arith.constant 0 : i32
    %c0_i32_1 = arith.constant 0 : i32
    return %c0_i32, %c0_i32_0 : i32, i32
  }
  func.func @transform_3(%arg0: i32) -> (i32, i32) {
    %c0_i32 = arith.constant 0 : i32
    %c0_i32_0 = arith.constant 0 : i32
    %c0_i32_1 = arith.constant 0 : i32
    return %c0_i32, %c0_i32_0 : i32, i32
  }
  func.func @transform_4(%arg0: i32) -> (i32, i32) {
    %c0_i32 = arith.constant 0 : i32
    %c0_i32_0 = arith.constant 0 : i32
    %c0_i32_1 = arith.constant 0 : i32
    return %c0_i32, %c0_i32_0 : i32, i32
  }
  func.func @transform_5(%arg0: i32) -> (i32, i32) {
    %c0_i32 = arith.constant 0 : i32
    %c0_i32_0 = arith.constant 0 : i32
    %c0_i32_1 = arith.constant 0 : i32
    return %c0_i32, %c0_i32_0 : i32, i32
  }
  func.func @transform_6(%arg0: i32) -> (i32, i32) {
    %c0_i32 = arith.constant 0 : i32
    %c0_i32_0 = arith.constant 0 : i32
    %c0_i32_1 = arith.constant 0 : i32
    return %c0_i32, %c0_i32_0 : i32, i32
  }
  func.func @transform_7(%arg0: i32) -> (i32, i32) {
    %c0_i32 = arith.constant 0 : i32
    %c0_i32_0 = arith.constant 0 : i32
    %c0_i32_1 = arith.constant 0 : i32
    return %c0_i32, %c0_i32_0 : i32, i32
  }
  func.func @transform_8(%arg0: i32) -> (i32, i32) {
    %c0_i32 = arith.constant 0 : i32
    %c0_i32_0 = arith.constant 0 : i32
    %c0_i32_1 = arith.constant 0 : i32
    return %c0_i32, %c0_i32_0 : i32, i32
  }
  func.func @transform_9(%arg0: i32) -> (i32, i32) {
    %c0_i32 = arith.constant 0 : i32
    %c0_i32_0 = arith.constant 0 : i32
    %c0_i32_1 = arith.constant 0 : i32
    return %c0_i32, %c0_i32_0 : i32, i32
  }
  func.func @transform_10(%arg0: i32) -> (i32, i32) {
    %c0_i32 = arith.constant 0 : i32
    %c0_i32_0 = arith.constant 0 : i32
    %c0_i32_1 = arith.constant 0 : i32
    return %c0_i32, %c0_i32_0 : i32, i32
  }
  func.func @transform_11(%arg0: i32) -> (i32, i32) {
    %c0_i32 = arith.constant 0 : i32
    %c0_i32_0 = arith.constant 0 : i32
    %c0_i32_1 = arith.constant 0 : i32
    return %c0_i32, %c0_i32_0 : i32, i32
  }
  func.func @transform_12(%arg0: i32) -> (i32, i32) {
    %c0_i32 = arith.constant 0 : i32
    %c0_i32_0 = arith.constant 0 : i32
    %c0_i32_1 = arith.constant 0 : i32
    return %c0_i32, %c0_i32_0 : i32, i32
  }
  func.func @transform_13(%arg0: i32) -> (i32, i32, i32) {
    %c0_i32 = arith.constant 0 : i32
    %c0_i32_0 = arith.constant 0 : i32
    %c0_i32_1 = arith.constant 0 : i32
    return %arg0, %c0_i32, %c0_i32_0 : i32, i32, i32
  }
}

</mosaic_0001>

<llo_original>
// kernel: tcn_forward.1
$region0: #{tcn_forward.1}
  #allocation0 [shape = 'u32[]', space=smem, size = 0x4, offset = 0x4, fixed_abs, tag = 'smem constant byte address 0x4 - core index']
  #allocation1 [shape = 'u32[144,128]{1,0:T(1,128)}', space=vmem, size = 0x12000, scoped, tag = 'internal scratch']
  %s0 = inlined_call_operand.vmem [shape: f32[2,8,128], index: 0, kind: input, shape index: {}]
  %s1 = inlined_call_operand.hbm [shape: f32[384,128], index: 1, kind: input, shape index: {}]
  %s2 = inlined_call_operand.vmem [shape: f32[1,128], index: 2, kind: input, shape index: {}]
  %s3 = inlined_call_operand.hbm [shape: f32[384,128], index: 3, kind: input, shape index: {}]
  %s4 = inlined_call_operand.vmem [shape: f32[1,128], index: 4, kind: input, shape index: {}]
  %s5 = inlined_call_operand.hbm [shape: f32[128,128], index: 5, kind: input, shape index: {}]
  %s6 = inlined_call_operand.vmem [shape: f32[1,128], index: 6, kind: input, shape index: {}]
  %s7 = inlined_call_operand.vmem [shape: f32[384,128], index: 7, kind: input, shape index: {}]
  %s8 = inlined_call_operand.vmem [shape: f32[1,128], index: 8, kind: input, shape index: {}]
  %s9 = inlined_call_operand.hbm [shape: f32[384,128], index: 9, kind: input, shape index: {}]
  %s10 = inlined_call_operand.vmem [shape: f32[1,128], index: 10, kind: input, shape index: {}]
  %s11 = inlined_call_operand.hbm [shape: f32[128,128], index: 11, kind: input, shape index: {}]
  %s12 = inlined_call_operand.vmem [shape: f32[1,128], index: 12, kind: input, shape index: {}]
  %s13 = inlined_call_operand.hbm [shape: f32[2,1,128], index: 13, kind: output, shape index: {}]
  %s14 = sld [smem:[#allocation0]]
  $region105: #{tcn_forward.1} parent=0
    _
  %s16 = ssub.s32 1, %s14
  %s17 = scalar_select 0, %s16, %s14
  $region1: #{tcn_forward.1} parent=0
    #allocation2 [shape = 'u8[196608]{0}', space=vmem, size = 0x30000, scoped, tag = 'input window, operand 1, single buffered']
    #allocation3 [shape = 's32[2]{0}', space=sflag, size = 0x8, scoped, tag = 'scoped memory for tcn_forward.1']
    #allocation4 [shape = 's32[2]{0}', space=sflag, size = 0x8, scoped, tag = 'scoped memory for tcn_forward.1']
    #allocation5 [shape = 'u8[196608]{0}', space=vmem, size = 0x30000, scoped, tag = 'input window, operand 3, single buffered']
    #allocation6 [shape = 's32[1]{0}', space=sflag, size = 0x4, scoped, tag = 'scoped memory for tcn_forward.1']
    #allocation7 [shape = 'u8[65536]{0}', space=vmem, size = 0x10000, scoped, tag = 'input window, operand 5, single buffered']
    #allocation8 [shape = 'u8[196608]{0}', space=vmem, size = 0x30000, scoped, tag = 'input window, operand 9, single buffered']
    #allocation9 [shape = 's32[1]{0}', space=sflag, size = 0x4, scoped, tag = 'scoped memory for tcn_forward.1']
    #allocation10 [shape = 'u8[65536]{0}', space=vmem, size = 0x10000, scoped, tag = 'input window, operand 11, single buffered']
    #allocation11 [shape = 'u8[1024]{0}', space=vmem, size = 0x400, scoped, tag = 'output window, operand 0']
    %18 = vsyncpa [#allocation3], 0
    %19 = vsyncpa [#allocation6], 0
    %20 = vsyncpa [#allocation9], 0
    %21 = vsyncpa [#allocation4], 0
    %s22 = scalar_lea.sflag [#allocation4], 1
    %23 = vsyncpa %s22, 0
    loop: start=0, step=1, limit=4
    $region2: #{tcn_forward.1} parent=1 // loop_pre_header
      _
    $region3: #{tcn_forward.1} parent=1 // loop_header
      %s25 = sphi 0, %s29
      %p26 = scmp.ge.s32.totalorder %s25, 4
      %s35 = sphi 0, %s37
      %s38 = sphi 0, %s35
      %s39 = sphi 0, %s38
      %s55 = sphi 0, %s39
      %s59 = sphi 0, %s59
      %s61 = sphi 0, %s59
      %s62 = sphi 0, %s61
      %s76 = sphi 0, %s62
      %s80 = sphi 0, %s80
      %s82 = sphi 0, %s80
      %s83 = sphi 0, %s82
      %s97 = sphi 0, %s83
      %s101 = sphi 0, %s101
      %s103 = sphi 0, %s101
      %s104 = sphi 0, %s103
      %s118 = sphi 0, %s104
      %s122 = sphi 0, %s122
      %s124 = sphi 0, %s122
      %s125 = sphi 0, %s124
      %s139 = sphi 0, %s125
      %s143 = sphi 0, %s143
      %s145 = sphi 0, %s143
      %s146 = sphi 0, %s145
      %s160 = sphi 0, %s146
      %s164 = sphi 0, %s164
      %s166 = sphi 0, %s164
      %s167 = sphi 0, %s166
      %s181 = sphi 0, %s167
      %s185 = sphi 0, %s185
      %s187 = sphi 0, %s185
      %s188 = sphi 0, %s187
      %s202 = sphi 0, %s188
      %s206 = sphi 0, %s206
      %s208 = sphi 0, %s206
      %s209 = sphi 0, %s208
      %s223 = sphi 0, %s209
      %s227 = sphi 0, %s227
      %s229 = sphi 0, %s227
      %s230 = sphi 0, %s229
      %s244 = sphi 0, %s230
      %s248 = sphi 0, %s248
      %s250 = sphi 0, %s248
      %s251 = sphi 0, %s250
      %s265 = sphi 0, %s251
      %s269 = sphi 0, %s269
      %s271 = sphi 0, %s269
      %s272 = sphi 0, %s271
      %s286 = sphi 0, %s272
      %s290 = sphi 0, %s290
      %s292 = sphi 0, %s290
      %s293 = sphi 0, %s292
      %s307 = sphi 0, %s293
      %s313 = sphi 0, %s315
      %s316 = sphi 0, %s313
      %s317 = sphi 0, %s316
      %s333 = sphi 0, %s317
    $region4: #{tcn_forward.1} parent=1 // loop_header_branch
      %28 = sbr.rel (%p26) target = $region8
    $region5: #{tcn_forward.1} parent=1 // loop_body
      %s30 = ssub.s32 %s25, 1
      %s31 = ssub.s32 %s25, 2
      %s32 = sadd.s32 %s25, 1
      %s33 = ssub.s32 %s25, %s32
      %p34 = scmp.eq.s32.totalorder %s33, 0
      %s36 = sadd.s32 %s35, 1
      %s37 = scalar_select %p34, %s35, %s36
      %p40 = pneg %p34
      %p41 = scmp.eq.s32.totalorder %s25, 1
      %p42 = por %p40, %p41
      %p43 = scmp.ne.s32.totalorder %s35, %s38
      %p44 = scmp.eq.s32.totalorder %s25, 0
      %p45 = por %p43, %p44
      %p46 = scmp.ne.s32.totalorder %s35, %s38
      %p47 = scmp.eq.s32.totalorder %s30, 1
      %p48 = por %p46, %p47
      %p49 = scmp.ne.s32.totalorder %s38, %s39
      %p50 = scmp.eq.s32.totalorder %s30, 0
      %p51 = por %p49, %p50
      %p52 = scmp.ne.s32.totalorder %s38, %s39
      %p53 = scmp.eq.s32.totalorder %s31, 1
      %p54 = por %p52, %p53
      %p56 = scmp.ne.s32.totalorder %s39, %s55
      %p57 = scmp.eq.s32.totalorder %s31, 0
      %p58 = por %p56, %p57
      %s60 = sadd.s32 %s59, 1
      %p63 = scmp.eq.s32.totalorder %s25, 1
      %p64 = scmp.ne.s32.totalorder %s59, %s61
      %p65 = scmp.eq.s32.totalorder %s25, 0
      %p66 = por %p64, %p65
      %p67 = scmp.ne.s32.totalorder %s59, %s61
      %p68 = scmp.eq.s32.totalorder %s30, 1
      %p69 = por %p67, %p68
      %p70 = scmp.ne.s32.totalorder %s61, %s62
      %p71 = scmp.eq.s32.totalorder %s30, 0
      %p72 = por %p70, %p71
      %p73 = scmp.ne.s32.totalorder %s61, %s62
      %p74 = scmp.eq.s32.totalorder %s31, 1
      %p75 = por %p73, %p74
      %p77 = scmp.ne.s32.totalorder %s62, %s76
      %p78 = scmp.eq.s32.totalorder %s31, 0
      %p79 = por %p77, %p78
      %s81 = sadd.s32 %s80, 1
      %p84 = scmp.eq.s32.totalorder %s25, 1
      %p85 = scmp.ne.s32.totalorder %s80, %s82
      %p86 = scmp.eq.s32.totalorder %s25, 0
      %p87 = por %p85, %p86
      %p88 = scmp.ne.s32.totalorder %s80, %s82
      %p89 = scmp.eq.s32.totalorder %s30, 1
      %p90 = por %p88, %p89
      %p91 = scmp.ne.s32.totalorder %s82, %s83
      %p92 = scmp.eq.s32.totalorder %s30, 0
      %p93 = por %p91, %p92
      %p94 = scmp.ne.s32.totalorder %s82, %s83
      %p95 = scmp.eq.s32.totalorder %s31, 1
      %p96 = por %p94, %p95
      %p98 = scmp.ne.s32.totalorder %s83, %s97
      %p99 = scmp.eq.s32.totalorder %s31, 0
      %p100 = por %p98, %p99
      %s102 = sadd.s32 %s101, 1
      %p105 = scmp.eq.s32.totalorder %s25, 1
      %p106 = scmp.ne.s32.totalorder %s101, %s103
      %p107 = scmp.eq.s32.totalorder %s25, 0
      %p108 = por %p106, %p107
      %p109 = scmp.ne.s32.totalorder %s101, %s103
      %p110 = scmp.eq.s32.totalorder %s30, 1
      %p111 = por %p109, %p110
      %p112 = scmp.ne.s32.totalorder %s103, %s104
      %p113 = scmp.eq.s32.totalorder %s30, 0
      %p114 = por %p112, %p113
      %p115 = scmp.ne.s32.totalorder %s103, %s104
      %p116 = scmp.eq.s32.totalorder %s31, 1
      %p117 = por %p115, %p116
      %p119 = scmp.ne.s32.totalorder %s104, %s118
      %p120 = scmp.eq.s32.totalorder %s31, 0
      %p121 = por %p119, %p120
      %s123 = sadd.s32 %s122, 1
      %p126 = scmp.eq.s32.totalorder %s25, 1
      %p127 = scmp.ne.s32.totalorder %s122, %s124
      %p128 = scmp.eq.s32.totalorder %s25, 0
      %p129 = por %p127, %p128
      %p130 = scmp.ne.s32.totalorder %s122, %s124
      %p131 = scmp.eq.s32.totalorder %s30, 1
      %p132 = por %p130, %p131
      %p133 = scmp.ne.s32.totalorder %s124, %s125
      %p134 = scmp.eq.s32.totalorder %s30, 0
      %p135 = por %p133, %p134
      %p136 = scmp.ne.s32.totalorder %s124, %s125
      %p137 = scmp.eq.s32.totalorder %s31, 1
      %p138 = por %p136, %p137
      %p140 = scmp.ne.s32.totalorder %s125, %s139
      %p141 = scmp.eq.s32.totalorder %s31, 0
      %p142 = por %p140, %p141
      %s144 = sadd.s32 %s143, 1
      %p147 = scmp.eq.s32.totalorder %s25, 1
      %p148 = scmp.ne.s32.totalorder %s143, %s145
      %p149 = scmp.eq.s32.totalorder %s25, 0
      %p150 = por %p148, %p149
      %p151 = scmp.ne.s32.totalorder %s143, %s145
      %p152 = scmp.eq.s32.totalorder %s30, 1
      %p153 = por %p151, %p152
      %p154 = scmp.ne.s32.totalorder %s145, %s146
      %p155 = scmp.eq.s32.totalorder %s30, 0
      %p156 = por %p154, %p155
      %p157 = scmp.ne.s32.totalorder %s145, %s146
      %p158 = scmp.eq.s32.totalorder %s31, 1
      %p159 = por %p157, %p158
      %p161 = scmp.ne.s32.totalorder %s146, %s160
      %p162 = scmp.eq.s32.totalorder %s31, 0
      %p163 = por %p161, %p162
      %s165 = sadd.s32 %s164, 1
      %p168 = scmp.eq.s32.totalorder %s25, 1
      %p169 = scmp.ne.s32.totalorder %s164, %s166
      %p170 = scmp.eq.s32.totalorder %s25, 0
      %p171 = por %p169, %p170
      %p172 = scmp.ne.s32.totalorder %s164, %s166
      %p173 = scmp.eq.s32.totalorder %s30, 1
      %p174 = por %p172, %p173
      %p175 = scmp.ne.s32.totalorder %s166, %s167
      %p176 = scmp.eq.s32.totalorder %s30, 0
      %p177 = por %p175, %p176
      %p178 = scmp.ne.s32.totalorder %s166, %s167
      %p179 = scmp.eq.s32.totalorder %s31, 1
      %p180 = por %p178, %p179
      %p182 = scmp.ne.s32.totalorder %s167, %s181
      %p183 = scmp.eq.s32.totalorder %s31, 0
      %p184 = por %p182, %p183
      %s186 = sadd.s32 %s185, 1
      %p189 = scmp.eq.s32.totalorder %s25, 1
      %p190 = scmp.ne.s32.totalorder %s185, %s187
      %p191 = scmp.eq.s32.totalorder %s25, 0
      %p192 = por %p190, %p191
      %p193 = scmp.ne.s32.totalorder %s185, %s187
      %p194 = scmp.eq.s32.totalorder %s30, 1
      %p195 = por %p193, %p194
      %p196 = scmp.ne.s32.totalorder %s187, %s188
      %p197 = scmp.eq.s32.totalorder %s30, 0
      %p198 = por %p196, %p197
      %p199 = scmp.ne.s32.totalorder %s187, %s188
      %p200 = scmp.eq.s32.totalorder %s31, 1
      %p201 = por %p199, %p200
      %p203 = scmp.ne.s32.totalorder %s188, %s202
      %p204 = scmp.eq.s32.totalorder %s31, 0
      %p205 = por %p203, %p204
      %s207 = sadd.s32 %s206, 1
      %p210 = scmp.eq.s32.totalorder %s25, 1
      %p211 = scmp.ne.s32.totalorder %s206, %s208
      %p212 = scmp.eq.s32.totalorder %s25, 0
      %p213 = por %p211, %p212
      %p214 = scmp.ne.s32.totalorder %s206, %s208
      %p215 = scmp.eq.s32.totalorder %s30, 1
      %p216 = por %p214, %p215
      %p217 = scmp.ne.s32.totalorder %s208, %s209
      %p218 = scmp.eq.s32.totalorder %s30, 0
      %p219 = por %p217, %p218
      %p220 = scmp.ne.s32.totalorder %s208, %s209
      %p221 = scmp.eq.s32.totalorder %s31, 1
      %p222 = por %p220, %p221
      %p224 = scmp.ne.s32.totalorder %s209, %s223
      %p225 = scmp.eq.s32.totalorder %s31, 0
      %p226 = por %p224, %p225
      %s228 = sadd.s32 %s227, 1
      %p231 = scmp.eq.s32.totalorder %s25, 1
      %p232 = scmp.ne.s32.totalorder %s227, %s229
      %p233 = scmp.eq.s32.totalorder %s25, 0
      %p234 = por %p232, %p233
      %p235 = scmp.ne.s32.totalorder %s227, %s229
      %p236 = scmp.eq.s32.totalorder %s30, 1
      %p237 = por %p235, %p236
      %p238 = scmp.ne.s32.totalorder %s229, %s230
      %p239 = scmp.eq.s32.totalorder %s30, 0
      %p240 = por %p238, %p239
      %p241 = scmp.ne.s32.totalorder %s229, %s230
      %p242 = scmp.eq.s32.totalorder %s31, 1
      %p243 = por %p241, %p242
      %p245 = scmp.ne.s32.totalorder %s230, %s244
      %p246 = scmp.eq.s32.totalorder %s31, 0
      %p247 = por %p245, %p246
      %s249 = sadd.s32 %s248, 1
      %p252 = scmp.eq.s32.totalorder %s25, 1
      %p253 = scmp.ne.s32.totalorder %s248, %s250
      %p254 = scmp.eq.s32.totalorder %s25, 0
      %p255 = por %p253, %p254
      %p256 = scmp.ne.s32.totalorder %s248, %s250
      %p257 = scmp.eq.s32.totalorder %s30, 1
      %p258 = por %p256, %p257
      %p259 = scmp.ne.s32.totalorder %s250, %s251
      %p260 = scmp.eq.s32.totalorder %s30, 0
      %p261 = por %p259, %p260
      %p262 = scmp.ne.s32.totalorder %s250, %s251
      %p263 = scmp.eq.s32.totalorder %s31, 1
      %p264 = por %p262, %p263
      %p266 = scmp.ne.s32.totalorder %s251, %s265
      %p267 = scmp.eq.s32.totalorder %s31, 0
      %p268 = por %p266, %p267
      %s270 = sadd.s32 %s269, 1
      %p273 = scmp.eq.s32.totalorder %s25, 1
      %p274 = scmp.ne.s32.totalorder %s269, %s271
      %p275 = scmp.eq.s32.totalorder %s25, 0
      %p276 = por %p274, %p275
      %p277 = scmp.ne.s32.totalorder %s269, %s271
      %p278 = scmp.eq.s32.totalorder %s30, 1
      %p279 = por %p277, %p278
      %p280 = scmp.ne.s32.totalorder %s271, %s272
      %p281 = scmp.eq.s32.totalorder %s30, 0
      %p282 = por %p280, %p281
      %p283 = scmp.ne.s32.totalorder %s271, %s272
      %p284 = scmp.eq.s32.totalorder %s31, 1
      %p285 = por %p283, %p284
      %p287 = scmp.ne.s32.totalorder %s272, %s286
      %p288 = scmp.eq.s32.totalorder %s31, 0
      %p289 = por %p287, %p288
      %s291 = sadd.s32 %s290, 1
      %p294 = scmp.eq.s32.totalorder %s25, 1
      %p295 = scmp.ne.s32.totalorder %s290, %s292
      %p296 = scmp.eq.s32.totalorder %s25, 0
      %p297 = por %p295, %p296
      %p298 = scmp.ne.s32.totalorder %s290, %s292
      %p299 = scmp.eq.s32.totalorder %s30, 1
      %p300 = por %p298, %p299
      %p301 = scmp.ne.s32.totalorder %s292, %s293
      %p302 = scmp.eq.s32.totalorder %s30, 0
      %p303 = por %p301, %p302
      %p304 = scmp.ne.s32.totalorder %s292, %s293
      %p305 = scmp.eq.s32.totalorder %s31, 1
      %p306 = por %p304, %p305
      %p308 = scmp.ne.s32.totalorder %s293, %s307
      %p309 = scmp.eq.s32.totalorder %s31, 0
      %p310 = por %p308, %p309
      %s311 = ssub.s32 %s25, %s32
      %p312 = scmp.eq.s32.totalorder %s311, 0
      %s314 = sadd.s32 %s313, 1
      %s315 = scalar_select %p312, %s313, %s314
      %p318 = pneg %p312
      %p319 = scmp.eq.s32.totalorder %s25, 1
      %p320 = por %p318, %p319
      %p321 = scmp.ne.s32.totalorder %s313, %s316
      %p322 = scmp.eq.s32.totalorder %s25, 0
      %p323 = por %p321, %p322
      %p324 = scmp.ne.s32.totalorder %s313, %s316
      %p325 = scmp.eq.s32.totalorder %s30, 1
      %p326 = por %p324, %p325
      %p327 = scmp.ne.s32.totalorder %s316, %s317
      %p328 = scmp.eq.s32.totalorder %s30, 0
      %p329 = por %p327, %p328
      %p330 = scmp.ne.s32.totalorder %s316, %s317
      %p331 = scmp.eq.s32.totalorder %s31, 1
      %p332 = por %p330, %p331
      %p334 = scmp.ne.s32.totalorder %s317, %s333
      %p335 = scmp.eq.s32.totalorder %s31, 0
      %p336 = por %p334, %p335
      %p337 = scmp.le.s32.totalorder 1, %s25
      %p338 = scmp.lt.s32.totalorder %s25, 3
      %p339 = pnand %p337, %p338
      %p340 = pneg %p339
      // Predicated region
      $region9: #{tcn_forward.1} parent=5 // pred_check
        _
      $region10: #{tcn_forward.1} parent=5 // pred_check_branch
        %342 = sbr.rel (%p339) target = $region12
      $region11: #{tcn_forward.1} parent=5 // pred_region
        %s343 = ssub.s32 %s25, 1
        // Predicated region
        $region13: #{tcn_forward.1} parent=11 // pred_check
          %p344 = pneg %p72
        $region14: #{tcn_forward.1} parent=11 // pred_check_branch
          %346 = sbr.rel (%p344) target = $region16
        $region15: #{tcn_forward.1} parent=11 // pred_region
          %s348 = ssub.s32 6144, 6144
          %349 = vsyncadd [#allocation3], %s348
          %s350 = sshll.u32 [#allocation2], 4
          %s351 = int_to_ptr.vmem [resolvable:$true] %s350
          %356 = dma.hbm_to_vmem [thread:$0]  %s1, 6144, %s351, [#allocation3], 128, 128, 8
        $region16: #{tcn_forward.1} parent=11 // pred_fallthru
          _
        // Predicated region
        $region17: #{tcn_forward.1} parent=11 // pred_check
          %p357 = pneg %p93
        $region18: #{tcn_forward.1} parent=11 // pred_check_branch
          %359 = sbr.rel (%p357) target = $region20
        $region19: #{tcn_forward.1} parent=11 // pred_region
          _
        $region20: #{tcn_forward.1} parent=11 // pred_fallthru
          _
        // Predicated region
        $region21: #{tcn_forward.1} parent=11 // pred_check
          %p360 = pneg %p114
        $region22: #{tcn_forward.1} parent=11 // pred_check_branch
          %362 = sbr.rel (%p360) target = $region24
        $region23: #{tcn_forward.1} parent=11 // pred_region
          %s364 = ssub.s32 6144, 6144
          %365 = vsyncadd [#allocation6], %s364
          %s366 = sshll.u32 [#allocation5], 4
          %s367 = int_to_ptr.vmem [resolvable:$true] %s366
          %372 = dma.hbm_to_vmem [thread:$0]  %s3, 6144, %s367, [#allocation6], 128, 128, 8
        $region24: #{tcn_forward.1} parent=11 // pred_fallthru
          _
        // Predicated region
        $region25: #{tcn_forward.1} parent=11 // pred_check
          %p373 = pneg %p135
        $region26: #{tcn_forward.1} parent=11 // pred_check_branch
          %375 = sbr.rel (%p373) target = $region28
        $region27: #{tcn_forward.1} parent=11 // pred_region
          _
        $region28: #{tcn_forward.1} parent=11 // pred_fallthru
          _
        // Predicated region
        $region29: #{tcn_forward.1} parent=11 // pred_check
          %p376 = pneg %p156
        $region30: #{tcn_forward.1} parent=11 // pred_check_branch
          %378 = sbr.rel (%p376) target = $region32
        $region31: #{tcn_forward.1} parent=11 // pred_region
          %s380 = ssub.s32 2048, 2048
          %381 = vsyncadd [#allocation6], %s380
          %s382 = sshll.u32 [#allocation7], 4
          %s383 = int_to_ptr.vmem [resolvable:$true] %s382
          %388 = dma.hbm_to_vmem [thread:$0]  %s5, 2048, %s383, [#allocation6], 128, 128, 8
        $region32: #{tcn_forward.1} parent=11 // pred_fallthru
          _
        // Predicated region
        $region33: #{tcn_forward.1} parent=11 // pred_check
          %p389 = pneg %p177
        $region34: #{tcn_forward.1} parent=11 // pred_check_branch
          %391 = sbr.rel (%p389) target = $region36
        $region35: #{tcn_forward.1} parent=11 // pred_region
          _
        $region36: #{tcn_forward.1} parent=11 // pred_fallthru
          _
        // Predicated region
        $region37: #{tcn_forward.1} parent=11 // pred_check
          %p392 = pneg %p198
        $region38: #{tcn_forward.1} parent=11 // pred_check_branch
          %394 = sbr.rel (%p392) target = $region40
        $region39: #{tcn_forward.1} parent=11 // pred_region
          _
        $region40: #{tcn_forward.1} parent=11 // pred_fallthru
          _
        // Predicated region
        $region41: #{tcn_forward.1} parent=11 // pred_check
          %p395 = pneg %p219
        $region42: #{tcn_forward.1} parent=11 // pred_check_branch
          %397 = sbr.rel (%p395) target = $region44
        $region43: #{tcn_forward.1} parent=11 // pred_region
          _
        $region44: #{tcn_forward.1} parent=11 // pred_fallthru
          _
        // Predicated region
        $region45: #{tcn_forward.1} parent=11 // pred_check
          %p398 = pneg %p240
        $region46: #{tcn_forward.1} parent=11 // pred_check_branch
          %400 = sbr.rel (%p398) target = $region48
        $region47: #{tcn_forward.1} parent=11 // pred_region
          %s402 = ssub.s32 6144, 6144
          %403 = vsyncadd [#allocation9], %s402
          %s404 = sshll.u32 [#allocation8], 4
          %s405 = int_to_ptr.vmem [resolvable:$true] %s404
          %410 = dma.hbm_to_vmem [thread:$0]  %s9, 6144, %s405, [#allocation9], 128, 128, 8
        $region48: #{tcn_forward.1} parent=11 // pred_fallthru
          _
        // Predicated region
        $region49: #{tcn_forward.1} parent=11 // pred_check
          %p411 = pneg %p261
        $region50: #{tcn_forward.1} parent=11 // pred_check_branch
          %413 = sbr.rel (%p411) target = $region52
        $region51: #{tcn_forward.1} parent=11 // pred_region
          _
        $region52: #{tcn_forward.1} parent=11 // pred_fallthru
          _
        // Predicated region
        $region53: #{tcn_forward.1} parent=11 // pred_check
          %p414 = pneg %p282
        $region54: #{tcn_forward.1} parent=11 // pred_check_branch
          %416 = sbr.rel (%p414) target = $region56
        $region55: #{tcn_forward.1} parent=11 // pred_region
          %s418 = ssub.s32 2048, 2048
          %419 = vsyncadd [#allocation9], %s418
          %s420 = sshll.u32 [#allocation10], 4
          %s421 = int_to_ptr.vmem [resolvable:$true] %s420
          %426 = dma.hbm_to_vmem [thread:$0]  %s11, 2048, %s421, [#allocation9], 128, 128, 8
        $region56: #{tcn_forward.1} parent=11 // pred_fallthru
          _
        // Predicated region
        $region57: #{tcn_forward.1} parent=11 // pred_check
          %p427 = pneg %p303
        $region58: #{tcn_forward.1} parent=11 // pred_check_branch
          %429 = sbr.rel (%p427) target = $region60
        $region59: #{tcn_forward.1} parent=11 // pred_region
          _
        $region60: #{tcn_forward.1} parent=11 // pred_fallthru
          _
      $region12: #{tcn_forward.1} parent=5 // pred_fallthru
        _
      %p430 = scmp.lt.s32.totalorder %s25, 2
      // Predicated region
      $region61: #{tcn_forward.1} parent=5 // pred_check
        %p431 = pneg %p430
      $region62: #{tcn_forward.1} parent=5 // pred_check_branch
        %433 = sbr.rel (%p431) target = $region64
      $region63: #{tcn_forward.1} parent=5 // pred_region
        // Predicated region
        $region65: #{tcn_forward.1} parent=63 // pred_check
          %p434 = pneg %p45
        $region66: #{tcn_forward.1} parent=63 // pred_check_branch
          %436 = sbr.rel (%p434) target = $region68
        $region67: #{tcn_forward.1} parent=63 // pred_region
          %p437 = scmp.lt.s32.totalorder %s25, 1
          %s438 = scalar_select %p437, %s25, 1
          %s439 = smul.addr %s438, 8
          %s440 = scalar_lea.vmem %s0, %s439
        $region68: #{tcn_forward.1} parent=63 // pred_fallthru
          _
      $region64: #{tcn_forward.1} parent=5 // pred_fallthru
        _
      %p441 = scmp.le.s32.totalorder 1, %s25
      %p442 = scmp.lt.s32.totalorder %s25, 3
      %p443 = pnand %p441, %p442
      %p444 = pneg %p443
      // Predicated region
      $region69: #{tcn_forward.1} parent=5 // pred_check
        _
      $region70: #{tcn_forward.1} parent=5 // pred_check_branch
        %446 = sbr.rel (%p443) target = $region72
      $region71: #{tcn_forward.1} parent=5 // pred_region
        %s447 = ssub.s32 %s25, 1
        // Predicated region
        $region73: #{tcn_forward.1} parent=71 // pred_check
          %p448 = pneg %p72
        $region74: #{tcn_forward.1} parent=71 // pred_check_branch
          %450 = sbr.rel (%p448) target = $region76
        $region75: #{tcn_forward.1} parent=71 // pred_region
          %451 = dma.done [#allocation3], 6144
        $region76: #{tcn_forward.1} parent=71 // pred_fallthru
          _
        // Predicated region
        $region77: #{tcn_forward.1} parent=71 // pred_check
          %p452 = pneg %p114
        $region78: #{tcn_forward.1} parent=71 // pred_check_branch
          %454 = sbr.rel (%p452) target = $region80
        $region79: #{tcn_forward.1} parent=71 // pred_region
          %455 = dma.done [#allocation6], 6144
        $region80: #{tcn_forward.1} parent=71 // pred_fallthru
          _
        // Predicated region
        $region81: #{tcn_forward.1} parent=71 // pred_check
          %p456 = pneg %p156
        $region82: #{tcn_forward.1} parent=71 // pred_check_branch
          %458 = sbr.rel (%p456) target = $region84
        $region83: #{tcn_forward.1} parent=71 // pred_region
          %459 = dma.done [#allocation6], 2048
        $region84: #{tcn_forward.1} parent=71 // pred_fallthru
          _
        // Predicated region
        $region85: #{tcn_forward.1} parent=71 // pred_check
          %p460 = pneg %p240
        $region86: #{tcn_forward.1} parent=71 // pred_check_branch
          %462 = sbr.rel (%p460) target = $region88
        $region87: #{tcn_forward.1} parent=71 // pred_region
          %463 = dma.done [#allocation9], 6144
        $region88: #{tcn_forward.1} parent=71 // pred_fallthru
          _
        // Predicated region
        $region89: #{tcn_forward.1} parent=71 // pred_check
          %p464 = pneg %p282
        $region90: #{tcn_forward.1} parent=71 // pred_check_branch
          %466 = sbr.rel (%p464) target = $region92
        $region91: #{tcn_forward.1} parent=71 // pred_region
          %467 = dma.done [#allocation9], 2048
        $region92: #{tcn_forward.1} parent=71 // pred_fallthru
          _
        %p468 = scmp.lt.s32.totalorder %s30, 1
        %s469 = scalar_select %p468, %s30, 1
        %s470 = smul.addr %s469, 8
        %s471 = scalar_lea.vmem %s0, %s470
        %p472 = pneg %p51
        %p473 = pneg %p48
        %p474 = pneg %p72
        %p475 = pneg %p69
        %p476 = pneg %p93
        %p477 = pneg %p90
        %p478 = pneg %p114
        %p479 = pneg %p111
        %p480 = pneg %p135
        %p481 = pneg %p132
        %p482 = pneg %p156
        %p483 = pneg %p153
        %p484 = pneg %p177
        %p485 = pneg %p174
        %p486 = pneg %p198
        %p487 = pneg %p195
        %p488 = pneg %p219
        %p489 = pneg %p216
        %p490 = pneg %p240
        %p491 = pneg %p237
        %p492 = pneg %p261
        %p493 = pneg %p258
        %p494 = pneg %p282
        %p495 = pneg %p279
        %p496 = pneg %p303
        %p497 = pneg %p300
        %p498 = pneg %p329
        %p499 = pneg %p326
        %s500 = sand.u32 %s316, 1
        %s501 = scalar_lea.sflag [#allocation4], %s500
        %s502 = sand.u32 %s316, 1
        %s503 = scalar_lea.vmem [#allocation11], %s502
        %p504 = scmp.lt.s32.totalorder %s30, 1
        %s505 = scalar_select %p504, %s30, 1
        %s506 = smul.addr %s505, 8
        %s507 = scalar_lea.vmem %s0, %s506
        %v508 = vld [vmem:[%s507] sm:$0xff]
        %v510 = vrot.slane %v508, 6
        %vm512 = vcmask 1041408
        %v513 = vsel %vm512, 0.0, %v510
        %vm515 = vcmask 1046528
        %v516 = vrot.slane %v513, 1
        %v517 = vrot.slane %v510, 1
        %v518 = vsel %vm515, %v516, %v517
        %vm520 = vcmask 1045504
        %v521 = vrot.slane %v513, 2
        %v522 = vrot.slane %v510, 2
        %v523 = vsel %vm520, %v521, %v522
        %v525 = vld [vmem:[#allocation2] sm:$0xff]
        %v526 = vld [vmem:[#allocation2 + $0x8] sm:$0xff]
        %v527 = vld [vmem:[#allocation2 + $0x10] sm:$0xff]
        %v528 = vld [vmem:[#allocation2 + $0x18] sm:$0xff]
        %v529 = vld [vmem:[#allocation2 + $0x20] sm:$0xff]
        %v530 = vld [vmem:[#allocation2 + $0x28] sm:$0xff]
        %v531 = vld [vmem:[#allocation2 + $0x30] sm:$0xff]
        %v532 = vld [vmem:[#allocation2 + $0x38] sm:$0xff]
        %v533 = vld [vmem:[#allocation2 + $0x40] sm:$0xff]
        %v534 = vld [vmem:[#allocation2 + $0x48] sm:$0xff]
        %v535 = vld [vmem:[#allocation2 + $0x50] sm:$0xff]
        %v536 = vld [vmem:[#allocation2 + $0x58] sm:$0xff]
        %v537 = vld [vmem:[#allocation2 + $0x60] sm:$0xff]
        %v538 = vld [vmem:[#allocation2 + $0x68] sm:$0xff]
        %v539 = vld [vmem:[#allocation2 + $0x70] sm:$0xff]
        %v540 = vld [vmem:[#allocation2 + $0x78] sm:$0xff]
        %v541 = vld [vmem:[#allocation2 + $0x80] sm:$0xff]
        %v542 = vld [vmem:[#allocation2 + $0x88] sm:$0xff]
        %v543 = vld [vmem:[#allocation2 + $0x90] sm:$0xff]
        %v544 = vld [vmem:[#allocation2 + $0x98] sm:$0xff]
        %v545 = vld [vmem:[#allocation2 + $0xa0] sm:$0xff]
        %v546 = vld [vmem:[#allocation2 + $0xa8] sm:$0xff]
        %v547 = vld [vmem:[#allocation2 + $0xb0] sm:$0xff]
        %v548 = vld [vmem:[#allocation2 + $0xb8] sm:$0xff]
        %v549 = vld [vmem:[#allocation2 + $0xc0] sm:$0xff]
        %v550 = vld [vmem:[#allocation2 + $0xc8] sm:$0xff]
        %v551 = vld [vmem:[#allocation2 + $0xd0] sm:$0xff]
        %v552 = vld [vmem:[#allocation2 + $0xd8] sm:$0xff]
        %v553 = vld [vmem:[#allocation2 + $0xe0] sm:$0xff]
        %v554 = vld [vmem:[#allocation2 + $0xe8] sm:$0xff]
        %v555 = vld [vmem:[#allocation2 + $0xf0] sm:$0xff]
        %v556 = vld [vmem:[#allocation2 + $0xf8] sm:$0xff]
        %v557 = vld [vmem:[#allocation2 + $0x100] sm:$0xff]
        %v558 = vld [vmem:[#allocation2 + $0x108] sm:$0xff]
        %v559 = vld [vmem:[#allocation2 + $0x110] sm:$0xff]
        %v560 = vld [vmem:[#allocation2 + $0x118] sm:$0xff]
        %v561 = vld [vmem:[#allocation2 + $0x120] sm:$0xff]
        %v562 = vld [vmem:[#allocation2 + $0x128] sm:$0xff]
        %v563 = vld [vmem:[#allocation2 + $0x130] sm:$0xff]
        %v564 = vld [vmem:[#allocation2 + $0x138] sm:$0xff]
        %v565 = vld [vmem:[#allocation2 + $0x140] sm:$0xff]
        %v566 = vld [vmem:[#allocation2 + $0x148] sm:$0xff]
        %v567 = vld [vmem:[#allocation2 + $0x150] sm:$0xff]
        %v568 = vld [vmem:[#allocation2 + $0x158] sm:$0xff]
        %v569 = vld [vmem:[#allocation2 + $0x160] sm:$0xff]
        %v570 = vld [vmem:[#allocation2 + $0x168] sm:$0xff]
        %v571 = vld [vmem:[#allocation2 + $0x170] sm:$0xff]
        %v572 = vld [vmem:[#allocation2 + $0x178] sm:$0xff]
        %v573 = vld [vmem:[%s2] sm:$0x1]
        %v575 = vlaneseq
        %v576 = vshrl.u32 %v575, 7
        %v577 = vsub.s32 0, %v576
        %v578 = vrot.slane %v573, %v577
        %580 = vmatprep.subr.mxu0 0.0
        %581 = vmatpush1.msra.mxu0 %v525
        %582 = vmatprep.subr.mxu0 0.0
        %583 = vmatpush1.msra.mxu0 %v526
        %584 = vmatprep.subr.mxu0 0.0
        %585 = vmatpush1.msra.mxu0 %v527
        %586 = vmatprep.subr.mxu0 0.0
        %587 = vmatpush1.msra.mxu0 %v528
        %588 = vmatprep.subr.mxu0 0.0
        %589 = vmatpush1.msra.mxu0 %v529
        %590 = vmatprep.subr.mxu0 0.0
        %591 = vmatpush1.msra.mxu0 %v530
        %592 = vmatprep.subr.mxu0 0.0
        %593 = vmatpush1.msra.mxu0 %v531
        %594 = vmatprep.subr.mxu0 0.0
        %595 = vmatpush1.msra.mxu0 %v532
        %596 = vmatprep.subr.mxu0 0.0
        %597 = vmatpush1.msra.mxu0 %v533
        %598 = vmatprep.subr.mxu0 0.0
        %599 = vmatpush1.msra.mxu0 %v534
        %600 = vmatprep.subr.mxu0 0.0
        %601 = vmatpush1.msra.mxu0 %v535
        %602 = vmatprep.subr.mxu0 0.0
        %603 = vmatpush1.msra.mxu0 %v536
        %604 = vmatprep.subr.mxu0 0.0
        %605 = vmatpush1.msra.mxu0 %v537
        %606 = vmatprep.subr.mxu0 0.0
        %607 = vmatpush1.msra.mxu0 %v538
        %608 = vmatprep.subr.mxu0 0.0
        %609 = vmatpush1.msra.mxu0 %v539
        %610 = vmatprep.subr.mxu0 0.0
        %611 = vmatpush1.msra.mxu0 %v540
        %612 = vmatprep.subr.mxu0 0.0
        %613 = vmatpush1.msra.mxu0 %v541
        %614 = vmatprep.subr.mxu0 0.0
        %615 = vmatpush1.msra.mxu0 %v542
        %616 = vmatprep.subr.mxu0 0.0
        %617 = vmatpush1.msra.mxu0 %v543
        %618 = vmatprep.subr.mxu0 0.0
        %619 = vmatpush1.msra.mxu0 %v544
        %620 = vmatprep.subr.mxu0 0.0
        %621 = vmatpush1.msra.mxu0 %v545
        %622 = vmatprep.subr.mxu0 0.0
        %623 = vmatpush1.msra.mxu0 %v546
        %624 = vmatprep.subr.mxu0 0.0
        %625 = vmatpush1.msra.mxu0 %v547
        %626 = vmatprep.subr.mxu0 0.0
        %627 = vmatpush1.msra.mxu0 %v548
        %628 = vmatprep.subr.mxu0 0.0
        %629 = vmatpush1.msra.mxu0 %v549
        %630 = vmatprep.subr.mxu0 0.0
        %631 = vmatpush1.msra.mxu0 %v550
        %632 = vmatprep.subr.mxu0 0.0
        %633 = vmatpush1.msra.mxu0 %v551
        %634 = vmatprep.subr.mxu0 0.0
        %635 = vmatpush1.msra.mxu0 %v552
        %636 = vmatprep.subr.mxu0 0.0
        %637 = vmatpush1.msra.mxu0 %v553
        %638 = vmatprep.subr.mxu0 0.0
        %639 = vmatpush1.msra.mxu0 %v554
        %640 = vmatprep.subr.mxu0 0.0
        %641 = vmatpush1.msra.mxu0 %v555
        %642 = vmatprep.subr.mxu0 0.0
        %643 = vmatpush1.msra.mxu0 %v556
        %644 = vmatprep.mubr.f32.mxu0 %v518
        %645 = vmatmul.mubr.f32.gmra.mrb[0].mxu0 %v513
        %v646 = vpop.f32.mrb[0].mxu0
        %v647 = vadd.f32 %v578, %v646
        %v648 = vpop.f32.mrb[0].mxu0
        %649 = vdwg.mxu0
        %650 = vmatprep.subr.mxu0 0.0
        %651 = vmatpush1.msra.mxu0 %v557
        %652 = vmatprep.subr.mxu0 0.0
        %653 = vmatpush1.msra.mxu0 %v558
        %654 = vmatprep.subr.mxu0 0.0
        %655 = vmatpush1.msra.mxu0 %v559
        %656 = vmatprep.subr.mxu0 0.0
        %657 = vmatpush1.msra.mxu0 %v560
        %658 = vmatprep.subr.mxu0 0.0
        %659 = vmatpush1.msra.mxu0 %v561
        %660 = vmatprep.subr.mxu0 0.0
        %661 = vmatpush1.msra.mxu0 %v562
        %662 = vmatprep.subr.mxu0 0.0
        %663 = vmatpush1.msra.mxu0 %v563
        %664 = vmatprep.subr.mxu0 0.0
        %665 = vmatpush1.msra.mxu0 %v564
        %666 = vmatprep.subr.mxu0 0.0
        %667 = vmatpush1.msra.mxu0 %v565
        %668 = vmatprep.subr.mxu0 0.0
        %669 = vmatpush1.msra.mxu0 %v566
        %670 = vmatprep.subr.mxu0 0.0
        %671 = vmatpush1.msra.mxu0 %v567
        %672 = vmatprep.subr.mxu0 0.0
        %673 = vmatpush1.msra.mxu0 %v568
        %674 = vmatprep.subr.mxu0 0.0
        %675 = vmatpush1.msra.mxu0 %v569
        %676 = vmatprep.subr.mxu0 0.0
        %677 = vmatpush1.msra.mxu0 %v570
        %678 = vmatprep.subr.mxu0 0.0
        %679 = vmatpush1.msra.mxu0 %v571
        %680 = vmatprep.subr.mxu0 0.0
        %681 = vmatpush1.msra.mxu0 %v572
        %682 = vmatprep.subr.mxu0 0.0
        %683 = vmatpush1.msra.mxu0 0.0
        %684 = vmatprep.subr.mxu0 0.0
        %685 = vmatpush1.msra.mxu0 0.0
        %686 = vmatprep.subr.mxu0 0.0
        %687 = vmatpush1.msra.mxu0 0.0
        %688 = vmatprep.subr.mxu0 0.0
        %689 = vmatpush1.msra.mxu0 0.0
        %690 = vmatprep.subr.mxu0 0.0
        %691 = vmatpush1.msra.mxu0 0.0
        %692 = vmatprep.subr.mxu0 0.0
        %693 = vmatpush1.msra.mxu0 0.0
        %694 = vmatprep.subr.mxu0 0.0
        %695 = vmatpush1.msra.mxu0 0.0
        %696 = vmatprep.subr.mxu0 0.0
        %697 = vmatpush1.msra.mxu0 0.0
        %698 = vmatprep.subr.mxu0 0.0
        %699 = vmatpush1.msra.mxu0 0.0
        %700 = vmatprep.subr.mxu0 0.0
        %701 = vmatpush1.msra.mxu0 0.0
        %702 = vmatprep.subr.mxu0 0.0
        %703 = vmatpush1.msra.mxu0 0.0
        %704 = vmatprep.subr.mxu0 0.0
        %705 = vmatpush1.msra.mxu0 0.0
        %706 = vmatprep.subr.mxu0 0.0
        %707 = vmatpush1.msra.mxu0 0.0
        %708 = vmatprep.subr.mxu0 0.0
        %709 = vmatpush1.msra.mxu0 0.0
        %710 = vmatprep.subr.mxu0 0.0
        %711 = vmatpush1.msra.mxu0 0.0
        %712 = vmatprep.subr.mxu0 0.0
        %713 = vmatpush1.msra.mxu0 0.0
        %714 = vmatprep.mubr.f32.mxu0 0.0
        %715 = vmatmul.mubr.f32.gmra.mrb[0].mxu0 %v523
        %v716 = vpop.f32.mrb[0].mxu0
        %v717 = vadd.f32 %v647, %v716
        %v718 = vpop.f32.mrb[0].mxu0
        %719 = vdwg.mxu0
        %v720 = vmax.f32 %v717, 0.0
        %v722 = vrot.slane %v720, 6
        %v724 = vsel %vm512, 0.0, %v722
        %v726 = vrot.slane %v724, 1
        %v727 = vrot.slane %v722, 1
        %v728 = vsel %vm515, %v726, %v727
        %v730 = vrot.slane %v724, 2
        %v731 = vrot.slane %v722, 2
        %v732 = vsel %vm520, %v730, %v731
        %v734 = vld [vmem:[#allocation5] sm:$0xff]
        %v735 = vld [vmem:[#allocation5 + $0x8] sm:$0xff]
        %v736 = vld [vmem:[#allocation5 + $0x10] sm:$0xff]
        %v737 = vld [vmem:[#allocation5 + $0x18] sm:$0xff]
        %v738 = vld [vmem:[#allocation5 + $0x20] sm:$0xff]
        %v739 = vld [vmem:[#allocation5 + $0x28] sm:$0xff]
        %v740 = vld [vmem:[#allocation5 + $0x30] sm:$0xff]
        %v741 = vld [vmem:[#allocation5 + $0x38] sm:$0xff]
        %v742 = vld [vmem:[#allocation5 + $0x40] sm:$0xff]
        %v743 = vld [vmem:[#allocation5 + $0x48] sm:$0xff]
        %v744 = vld [vmem:[#allocation5 + $0x50] sm:$0xff]
        %v745 = vld [vmem:[#allocation5 + $0x58] sm:$0xff]
        %v746 = vld [vmem:[#allocation5 + $0x60] sm:$0xff]
        %v747 = vld [vmem:[#allocation5 + $0x68] sm:$0xff]
        %v748 = vld [vmem:[#allocation5 + $0x70] sm:$0xff]
        %v749 = vld [vmem:[#allocation5 + $0x78] sm:$0xff]
        %v750 = vld [vmem:[#allocation5 + $0x80] sm:$0xff]
        %v751 = vld [vmem:[#allocation5 + $0x88] sm:$0xff]
        %v752 = vld [vmem:[#allocation5 + $0x90] sm:$0xff]
        %v753 = vld [vmem:[#allocation5 + $0x98] sm:$0xff]
        %v754 = vld [vmem:[#allocation5 + $0xa0] sm:$0xff]
        %v755 = vld [vmem:[#allocation5 + $0xa8] sm:$0xff]
        %v756 = vld [vmem:[#allocation5 + $0xb0] sm:$0xff]
        %v757 = vld [vmem:[#allocation5 + $0xb8] sm:$0xff]
        %v758 = vld [vmem:[#allocation5 + $0xc0] sm:$0xff]
        %v759 = vld [vmem:[#allocation5 + $0xc8] sm:$0xff]
        %v760 = vld [vmem:[#allocation5 + $0xd0] sm:$0xff]
        %v761 = vld [vmem:[#allocation5 + $0xd8] sm:$0xff]
        %v762 = vld [vmem:[#allocation5 + $0xe0] sm:$0xff]
        %v763 = vld [vmem:[#allocation5 + $0xe8] sm:$0xff]
        %v764 = vld [vmem:[#allocation5 + $0xf0] sm:$0xff]
        %v765 = vld [vmem:[#allocation5 + $0xf8] sm:$0xff]
        %v766 = vld [vmem:[#allocation5 + $0x100] sm:$0xff]
        %v767 = vld [vmem:[#allocation5 + $0x108] sm:$0xff]
        %v768 = vld [vmem:[#allocation5 + $0x110] sm:$0xff]
        %v769 = vld [vmem:[#allocation5 + $0x118] sm:$0xff]
        %v770 = vld [vmem:[#allocation5 + $0x120] sm:$0xff]
        %v771 = vld [vmem:[#allocation5 + $0x128] sm:$0xff]
        %v772 = vld [vmem:[#allocation5 + $0x130] sm:$0xff]
        %v773 = vld [vmem:[#allocation5 + $0x138] sm:$0xff]
        %v774 = vld [vmem:[#allocation5 + $0x140] sm:$0xff]
        %v775 = vld [vmem:[#allocation5 + $0x148] sm:$0xff]
        %v776 = vld [vmem:[#allocation5 + $0x150] sm:$0xff]
        %v777 = vld [vmem:[#allocation5 + $0x158] sm:$0xff]
        %v778 = vld [vmem:[#allocation5 + $0x160] sm:$0xff]
        %v779 = vld [vmem:[#allocation5 + $0x168] sm:$0xff]
        %v780 = vld [vmem:[#allocation5 + $0x170] sm:$0xff]
        %v781 = vld [vmem:[#allocation5 + $0x178] sm:$0xff]
        %v782 = vld [vmem:[%s4] sm:$0x1]
        %v784 = vlaneseq
        %v785 = vshrl.u32 %v784, 7
        %v786 = vsub.s32 0, %v785
        %v787 = vrot.slane %v782, %v786
        %789 = vmatprep.subr.mxu0 0.0
        %790 = vmatpush1.msra.mxu0 %v734
        %791 = vmatprep.subr.mxu0 0.0
        %792 = vmatpush1.msra.mxu0 %v735
        %793 = vmatprep.subr.mxu0 0.0
        %794 = vmatpush1.msra.mxu0 %v736
        %795 = vmatprep.subr.mxu0 0.0
        %796 = vmatpush1.msra.mxu0 %v737
        %797 = vmatprep.subr.mxu0 0.0
        %798 = vmatpush1.msra.mxu0 %v738
        %799 = vmatprep.subr.mxu0 0.0
        %800 = vmatpush1.msra.mxu0 %v739
        %801 = vmatprep.subr.mxu0 0.0
        %802 = vmatpush1.msra.mxu0 %v740
        %803 = vmatprep.subr.mxu0 0.0
        %804 = vmatpush1.msra.mxu0 %v741
        %805 = vmatprep.subr.mxu0 0.0
        %806 = vmatpush1.msra.mxu0 %v742
        %807 = vmatprep.subr.mxu0 0.0
        %808 = vmatpush1.msra.mxu0 %v743
        %809 = vmatprep.subr.mxu0 0.0
        %810 = vmatpush1.msra.mxu0 %v744
        %811 = vmatprep.subr.mxu0 0.0
        %812 = vmatpush1.msra.mxu0 %v745
        %813 = vmatprep.subr.mxu0 0.0
        %814 = vmatpush1.msra.mxu0 %v746
        %815 = vmatprep.subr.mxu0 0.0
        %816 = vmatpush1.msra.mxu0 %v747
        %817 = vmatprep.subr.mxu0 0.0
        %818 = vmatpush1.msra.mxu0 %v748
        %819 = vmatprep.subr.mxu0 0.0
        %820 = vmatpush1.msra.mxu0 %v749
        %821 = vmatprep.subr.mxu0 0.0
        %822 = vmatpush1.msra.mxu0 %v750
        %823 = vmatprep.subr.mxu0 0.0
        %824 = vmatpush1.msra.mxu0 %v751
        %825 = vmatprep.subr.mxu0 0.0
        %826 = vmatpush1.msra.mxu0 %v752
        %827 = vmatprep.subr.mxu0 0.0
        %828 = vmatpush1.msra.mxu0 %v753
        %829 = vmatprep.subr.mxu0 0.0
        %830 = vmatpush1.msra.mxu0 %v754
        %831 = vmatprep.subr.mxu0 0.0
        %832 = vmatpush1.msra.mxu0 %v755
        %833 = vmatprep.subr.mxu0 0.0
        %834 = vmatpush1.msra.mxu0 %v756
        %835 = vmatprep.subr.mxu0 0.0
        %836 = vmatpush1.msra.mxu0 %v757
        %837 = vmatprep.subr.mxu0 0.0
        %838 = vmatpush1.msra.mxu0 %v758
        %839 = vmatprep.subr.mxu0 0.0
        %840 = vmatpush1.msra.mxu0 %v759
        %841 = vmatprep.subr.mxu0 0.0
        %842 = vmatpush1.msra.mxu0 %v760
        %843 = vmatprep.subr.mxu0 0.0
        %844 = vmatpush1.msra.mxu0 %v761
        %845 = vmatprep.subr.mxu0 0.0
        %846 = vmatpush1.msra.mxu0 %v762
        %847 = vmatprep.subr.mxu0 0.0
        %848 = vmatpush1.msra.mxu0 %v763
        %849 = vmatprep.subr.mxu0 0.0
        %850 = vmatpush1.msra.mxu0 %v764
        %851 = vmatprep.subr.mxu0 0.0
        %852 = vmatpush1.msra.mxu0 %v765
        %853 = vmatprep.mubr.f32.mxu0 %v728
        %854 = vmatmul.mubr.f32.gmra.mrb[0].mxu0 %v724
        %v855 = vpop.f32.mrb[0].mxu0
        %v856 = vadd.f32 %v787, %v855
        %v857 = vpop.f32.mrb[0].mxu0
        %858 = vdwg.mxu0
        %859 = vmatprep.subr.mxu0 0.0
        %860 = vmatpush1.msra.mxu0 %v766
        %861 = vmatprep.subr.mxu0 0.0
        %862 = vmatpush1.msra.mxu0 %v767
        %863 = vmatprep.subr.mxu0 0.0
        %864 = vmatpush1.msra.mxu0 %v768
        %865 = vmatprep.subr.mxu0 0.0
        %866 = vmatpush1.msra.mxu0 %v769
        %867 = vmatprep.subr.mxu0 0.0
        %868 = vmatpush1.msra.mxu0 %v770
        %869 = vmatprep.subr.mxu0 0.0
        %870 = vmatpush1.msra.mxu0 %v771
        %871 = vmatprep.subr.mxu0 0.0
        %872 = vmatpush1.msra.mxu0 %v772
        %873 = vmatprep.subr.mxu0 0.0
        %874 = vmatpush1.msra.mxu0 %v773
        %875 = vmatprep.subr.mxu0 0.0
        %876 = vmatpush1.msra.mxu0 %v774
        %877 = vmatprep.subr.mxu0 0.0
        %878 = vmatpush1.msra.mxu0 %v775
        %879 = vmatprep.subr.mxu0 0.0
        %880 = vmatpush1.msra.mxu0 %v776
        %881 = vmatprep.subr.mxu0 0.0
        %882 = vmatpush1.msra.mxu0 %v777
        %883 = vmatprep.subr.mxu0 0.0
        %884 = vmatpush1.msra.mxu0 %v778
        %885 = vmatprep.subr.mxu0 0.0
        %886 = vmatpush1.msra.mxu0 %v779
        %887 = vmatprep.subr.mxu0 0.0
        %888 = vmatpush1.msra.mxu0 %v780
        %889 = vmatprep.subr.mxu0 0.0
        %890 = vmatpush1.msra.mxu0 %v781
        %891 = vmatprep.subr.mxu0 0.0
        %892 = vmatpush1.msra.mxu0 0.0
        %893 = vmatprep.subr.mxu0 0.0
        %894 = vmatpush1.msra.mxu0 0.0
        %895 = vmatprep.subr.mxu0 0.0
        %896 = vmatpush1.msra.mxu0 0.0
        %897 = vmatprep.subr.mxu0 0.0
        %898 = vmatpush1.msra.mxu0 0.0
        %899 = vmatprep.subr.mxu0 0.0
        %900 = vmatpush1.msra.mxu0 0.0
        %901 = vmatprep.subr.mxu0 0.0
        %902 = vmatpush1.msra.mxu0 0.0
        %903 = vmatprep.subr.mxu0 0.0
        %904 = vmatpush1.msra.mxu0 0.0
        %905 = vmatprep.subr.mxu0 0.0
        %906 = vmatpush1.msra.mxu0 0.0
        %907 = vmatprep.subr.mxu0 0.0
        %908 = vmatpush1.msra.mxu0 0.0
        %909 = vmatprep.subr.mxu0 0.0
        %910 = vmatpush1.msra.mxu0 0.0
        %911 = vmatprep.subr.mxu0 0.0
        %912 = vmatpush1.msra.mxu0 0.0
        %913 = vmatprep.subr.mxu0 0.0
        %914 = vmatpush1.msra.mxu0 0.0
        %915 = vmatprep.subr.mxu0 0.0
        %916 = vmatpush1.msra.mxu0 0.0
        %917 = vmatprep.subr.mxu0 0.0
        %918 = vmatpush1.msra.mxu0 0.0
        %919 = vmatprep.subr.mxu0 0.0
        %920 = vmatpush1.msra.mxu0 0.0
        %921 = vmatprep.subr.mxu0 0.0
        %922 = vmatpush1.msra.mxu0 0.0
        %923 = vmatprep.mubr.f32.mxu0 0.0
        %924 = vmatmul.mubr.f32.gmra.mrb[0].mxu0 %v732
        %v925 = vpop.f32.mrb[0].mxu0
        %v926 = vadd.f32 %v856, %v925
        %v927 = vpop.f32.mrb[0].mxu0
        %928 = vdwg.mxu0
        %v929 = vmax.f32 %v926, 0.0
        %v930 = vld [vmem:[#allocation7] sm:$0xff]
        %v931 = vld [vmem:[#allocation7 + $0x8] sm:$0xff]
        %v932 = vld [vmem:[#allocation7 + $0x10] sm:$0xff]
        %v933 = vld [vmem:[#allocation7 + $0x18] sm:$0xff]
        %v934 = vld [vmem:[#allocation7 + $0x20] sm:$0xff]
        %v935 = vld [vmem:[#allocation7 + $0x28] sm:$0xff]
        %v936 = vld [vmem:[#allocation7 + $0x30] sm:$0xff]
        %v937 = vld [vmem:[#allocation7 + $0x38] sm:$0xff]
        %v938 = vld [vmem:[#allocation7 + $0x40] sm:$0xff]
        %v939 = vld [vmem:[#allocation7 + $0x48] sm:$0xff]
        %v940 = vld [vmem:[#allocation7 + $0x50] sm:$0xff]
        %v941 = vld [vmem:[#allocation7 + $0x58] sm:$0xff]
        %v942 = vld [vmem:[#allocation7 + $0x60] sm:$0xff]
        %v943 = vld [vmem:[#allocation7 + $0x68] sm:$0xff]
        %v944 = vld [vmem:[#allocation7 + $0x70] sm:$0xff]
        %v945 = vld [vmem:[#allocation7 + $0x78] sm:$0xff]
        %v946 = vld [vmem:[%s6] sm:$0x1]
        %v948 = vlaneseq
        %v949 = vshrl.u32 %v948, 7
        %v950 = vsub.s32 0, %v949
        %v951 = vrot.slane %v946, %v950
        %953 = vmatprep.subr.mxu0 0.0
        %954 = vmatpush1.msra.mxu0 %v930
        %955 = vmatprep.subr.mxu0 0.0
        %956 = vmatpush1.msra.mxu0 %v931
        %957 = vmatprep.subr.mxu0 0.0
        %958 = vmatpush1.msra.mxu0 %v932
        %959 = vmatprep.subr.mxu0 0.0
        %960 = vmatpush1.msra.mxu0 %v933
        %961 = vmatprep.subr.mxu0 0.0
        %962 = vmatpush1.msra.mxu0 %v934
        %963 = vmatprep.subr.mxu0 0.0
        %964 = vmatpush1.msra.mxu0 %v935
        %965 = vmatprep.subr.mxu0 0.0
        %966 = vmatpush1.msra.mxu0 %v936
        %967 = vmatprep.subr.mxu0 0.0
        %968 = vmatpush1.msra.mxu0 %v937
        %969 = vmatprep.subr.mxu0 0.0
        %970 = vmatpush1.msra.mxu0 %v938
        %971 = vmatprep.subr.mxu0 0.0
        %972 = vmatpush1.msra.mxu0 %v939
        %973 = vmatprep.subr.mxu0 0.0
        %974 = vmatpush1.msra.mxu0 %v940
        %975 = vmatprep.subr.mxu0 0.0
        %976 = vmatpush1.msra.mxu0 %v941
        %977 = vmatprep.subr.mxu0 0.0
        %978 = vmatpush1.msra.mxu0 %v942
        %979 = vmatprep.subr.mxu0 0.0
        %980 = vmatpush1.msra.mxu0 %v943
        %981 = vmatprep.subr.mxu0 0.0
        %982 = vmatpush1.msra.mxu0 %v944
        %983 = vmatprep.subr.mxu0 0.0
        %984 = vmatpush1.msra.mxu0 %v945
        %985 = vmatprep.subr.mxu0 0.0
        %986 = vmatpush1.msra.mxu0 0.0
        %987 = vmatprep.subr.mxu0 0.0
        %988 = vmatpush1.msra.mxu0 0.0
        %989 = vmatprep.subr.mxu0 0.0
        %990 = vmatpush1.msra.mxu0 0.0
        %991 = vmatprep.subr.mxu0 0.0
        %992 = vmatpush1.msra.mxu0 0.0
        %993 = vmatprep.subr.mxu0 0.0
        %994 = vmatpush1.msra.mxu0 0.0
        %995 = vmatprep.subr.mxu0 0.0
        %996 = vmatpush1.msra.mxu0 0.0
        %997 = vmatprep.subr.mxu0 0.0
        %998 = vmatpush1.msra.mxu0 0.0
        %999 = vmatprep.subr.mxu0 0.0
        %1000 = vmatpush1.msra.mxu0 0.0
        %1001 = vmatprep.subr.mxu0 0.0
        %1002 = vmatpush1.msra.mxu0 0.0
        %1003 = vmatprep.subr.mxu0 0.0
        %1004 = vmatpush1.msra.mxu0 0.0
        %1005 = vmatprep.subr.mxu0 0.0
        %1006 = vmatpush1.msra.mxu0 0.0
        %1007 = vmatprep.subr.mxu0 0.0
        %1008 = vmatpush1.msra.mxu0 0.0
        %1009 = vmatprep.subr.mxu0 0.0
        %1010 = vmatpush1.msra.mxu0 0.0
        %1011 = vmatprep.subr.mxu0 0.0
        %1012 = vmatpush1.msra.mxu0 0.0
        %1013 = vmatprep.subr.mxu0 0.0
        %1014 = vmatpush1.msra.mxu0 0.0
        %1015 = vmatprep.subr.mxu0 0.0
        %1016 = vmatpush1.msra.mxu0 0.0
        %1017 = vmatprep.mubr.f32.mxu0 0.0
        %1018 = vmatmul.mubr.f32.gmra.mrb[0].mxu0 %v508
        %v1019 = vpop.f32.mrb[0].mxu0
        %v1020 = vadd.f32 %v951, %v1019
        %v1021 = vpop.f32.mrb[0].mxu0
        %1022 = vdwg.mxu0
        %v1023 = vadd.f32 %v929, %v1020
        %v1024 = vmax.f32 %v1023, 0.0
        %v1026 = vrot.slane %v1024, 4
        %vm1028 = vcmask 1043456
        %v1029 = vsel %vm1028, 0.0, %v1026
        %v1031 = vrot.slane %v1029, 2
        %v1032 = vrot.slane %v1026, 2
        %v1033 = vsel %vm520, %v1031, %v1032
        %v1035 = vrot.slane %v1029, 4
        %v1036 = vrot.slane %v1026, 4
        %v1037 = vsel %vm1028, %v1035, %v1036
        %v1039 = vld [vmem:[%s7] sm:$0xff]
        %v1040 = vld [vmem:[%s7 + $0x8] sm:$0xff]
        %v1041 = vld [vmem:[%s7 + $0x10] sm:$0xff]
        %v1042 = vld [vmem:[%s7 + $0x18] sm:$0xff]
        %v1043 = vld [vmem:[%s7 + $0x20] sm:$0xff]
        %v1044 = vld [vmem:[%s7 + $0x28] sm:$0xff]
        %v1045 = vld [vmem:[%s7 + $0x30] sm:$0xff]
        %v1046 = vld [vmem:[%s7 + $0x38] sm:$0xff]
        %v1047 = vld [vmem:[%s7 + $0x40] sm:$0xff]
        %v1048 = vld [vmem:[%s7 + $0x48] sm:$0xff]
        %v1049 = vld [vmem:[%s7 + $0x50] sm:$0xff]
        %v1050 = vld [vmem:[%s7 + $0x58] sm:$0xff]
        %v1051 = vld [vmem:[%s7 + $0x60] sm:$0xff]
        %v1052 = vld [vmem:[%s7 + $0x68] sm:$0xff]
        %v1053 = vld [vmem:[%s7 + $0x70] sm:$0xff]
        %v1054 = vld [vmem:[%s7 + $0x78] sm:$0xff]
        %v1055 = vld [vmem:[%s7 + $0x80] sm:$0xff]
        %v1056 = vld [vmem:[%s7 + $0x88] sm:$0xff]
        %v1057 = vld [vmem:[%s7 + $0x90] sm:$0xff]
        %v1058 = vld [vmem:[%s7 + $0x98] sm:$0xff]
        %v1059 = vld [vmem:[%s7 + $0xa0] sm:$0xff]
        %v1060 = vld [vmem:[%s7 + $0xa8] sm:$0xff]
        %v1061 = vld [vmem:[%s7 + $0xb0] sm:$0xff]
        %v1062 = vld [vmem:[%s7 + $0xb8] sm:$0xff]
        %v1063 = vld [vmem:[%s7 + $0xc0] sm:$0xff]
        %v1064 = vld [vmem:[%s7 + $0xc8] sm:$0xff]
        %v1065 = vld [vmem:[%s7 + $0xd0] sm:$0xff]
        %v1066 = vld [vmem:[%s7 + $0xd8] sm:$0xff]
        %v1067 = vld [vmem:[%s7 + $0xe0] sm:$0xff]
        %v1068 = vld [vmem:[%s7 + $0xe8] sm:$0xff]
        %v1069 = vld [vmem:[%s7 + $0xf0] sm:$0xff]
        %v1070 = vld [vmem:[%s7 + $0xf8] sm:$0xff]
        %v1071 = vld [vmem:[%s7 + $0x100] sm:$0xff]
        %v1072 = vld [vmem:[%s7 + $0x108] sm:$0xff]
        %v1073 = vld [vmem:[%s7 + $0x110] sm:$0xff]
        %v1074 = vld [vmem:[%s7 + $0x118] sm:$0xff]
        %v1075 = vld [vmem:[%s7 + $0x120] sm:$0xff]
        %v1076 = vld [vmem:[%s7 + $0x128] sm:$0xff]
        %v1077 = vld [vmem:[%s7 + $0x130] sm:$0xff]
        %v1078 = vld [vmem:[%s7 + $0x138] sm:$0xff]
        %v1079 = vld [vmem:[%s7 + $0x140] sm:$0xff]
        %v1080 = vld [vmem:[%s7 + $0x148] sm:$0xff]
        %v1081 = vld [vmem:[%s7 + $0x150] sm:$0xff]
        %v1082 = vld [vmem:[%s7 + $0x158] sm:$0xff]
        %v1083 = vld [vmem:[%s7 + $0x160] sm:$0xff]
        %v1084 = vld [vmem:[%s7 + $0x168] sm:$0xff]
        %v1085 = vld [vmem:[%s7 + $0x170] sm:$0xff]
        %v1086 = vld [vmem:[%s7 + $0x178] sm:$0xff]
        %v1087 = vld [vmem:[%s8] sm:$0x1]
        %v1089 = vlaneseq
        %v1090 = vshrl.u32 %v1089, 7
        %v1091 = vsub.s32 0, %v1090
        %v1092 = vrot.slane %v1087, %v1091
        %1094 = vmatprep.subr.mxu0 0.0
        %1095 = vmatpush1.msra.mxu0 %v1039
        %1096 = vmatprep.subr.mxu0 0.0
        %1097 = vmatpush1.msra.mxu0 %v1040
        %1098 = vmatprep.subr.mxu0 0.0
        %1099 = vmatpush1.msra.mxu0 %v1041
        %1100 = vmatprep.subr.mxu0 0.0
        %1101 = vmatpush1.msra.mxu0 %v1042
        %1102 = vmatprep.subr.mxu0 0.0
        %1103 = vmatpush1.msra.mxu0 %v1043
        %1104 = vmatprep.subr.mxu0 0.0
        %1105 = vmatpush1.msra.mxu0 %v1044
        %1106 = vmatprep.subr.mxu0 0.0
        %1107 = vmatpush1.msra.mxu0 %v1045
        %1108 = vmatprep.subr.mxu0 0.0
        %1109 = vmatpush1.msra.mxu0 %v1046
        %1110 = vmatprep.subr.mxu0 0.0
        %1111 = vmatpush1.msra.mxu0 %v1047
        %1112 = vmatprep.subr.mxu0 0.0
        %1113 = vmatpush1.msra.mxu0 %v1048
        %1114 = vmatprep.subr.mxu0 0.0
        %1115 = vmatpush1.msra.mxu0 %v1049
        %1116 = vmatprep.subr.mxu0 0.0
        %1117 = vmatpush1.msra.mxu0 %v1050
        %1118 = vmatprep.subr.mxu0 0.0
        %1119 = vmatpush1.msra.mxu0 %v1051
        %1120 = vmatprep.subr.mxu0 0.0
        %1121 = vmatpush1.msra.mxu0 %v1052
        %1122 = vmatprep.subr.mxu0 0.0
        %1123 = vmatpush1.msra.mxu0 %v1053
        %1124 = vmatprep.subr.mxu0 0.0
        %1125 = vmatpush1.msra.mxu0 %v1054
        %1126 = vmatprep.subr.mxu0 0.0
        %1127 = vmatpush1.msra.mxu0 %v1055
        %1128 = vmatprep.subr.mxu0 0.0
        %1129 = vmatpush1.msra.mxu0 %v1056
        %1130 = vmatprep.subr.mxu0 0.0
        %1131 = vmatpush1.msra.mxu0 %v1057
        %1132 = vmatprep.subr.mxu0 0.0
        %1133 = vmatpush1.msra.mxu0 %v1058
        %1134 = vmatprep.subr.mxu0 0.0
        %1135 = vmatpush1.msra.mxu0 %v1059
        %1136 = vmatprep.subr.mxu0 0.0
        %1137 = vmatpush1.msra.mxu0 %v1060
        %1138 = vmatprep.subr.mxu0 0.0
        %1139 = vmatpush1.msra.mxu0 %v1061
        %1140 = vmatprep.subr.mxu0 0.0
        %1141 = vmatpush1.msra.mxu0 %v1062
        %1142 = vmatprep.subr.mxu0 0.0
        %1143 = vmatpush1.msra.mxu0 %v1063
        %1144 = vmatprep.subr.mxu0 0.0
        %1145 = vmatpush1.msra.mxu0 %v1064
        %1146 = vmatprep.subr.mxu0 0.0
        %1147 = vmatpush1.msra.mxu0 %v1065
        %1148 = vmatprep.subr.mxu0 0.0
        %1149 = vmatpush1.msra.mxu0 %v1066
        %1150 = vmatprep.subr.mxu0 0.0
        %1151 = vmatpush1.msra.mxu0 %v1067
        %1152 = vmatprep.subr.mxu0 0.0
        %1153 = vmatpush1.msra.mxu0 %v1068
        %1154 = vmatprep.subr.mxu0 0.0
        %1155 = vmatpush1.msra.mxu0 %v1069
        %1156 = vmatprep.subr.mxu0 0.0
        %1157 = vmatpush1.msra.mxu0 %v1070
        %1158 = vmatprep.mubr.f32.mxu0 %v1033
        %1159 = vmatmul.mubr.f32.gmra.mrb[0].mxu0 %v1029
        %v1160 = vpop.f32.mrb[0].mxu0
        %v1161 = vadd.f32 %v1092, %v1160
        %v1162 = vpop.f32.mrb[0].mxu0
        %1163 = vdwg.mxu0
        %1164 = vmatprep.subr.mxu0 0.0
        %1165 = vmatpush1.msra.mxu0 %v1071
        %1166 = vmatprep.subr.mxu0 0.0
        %1167 = vmatpush1.msra.mxu0 %v1072
        %1168 = vmatprep.subr.mxu0 0.0
        %1169 = vmatpush1.msra.mxu0 %v1073
        %1170 = vmatprep.subr.mxu0 0.0
        %1171 = vmatpush1.msra.mxu0 %v1074
        %1172 = vmatprep.subr.mxu0 0.0
        %1173 = vmatpush1.msra.mxu0 %v1075
        %1174 = vmatprep.subr.mxu0 0.0
        %1175 = vmatpush1.msra.mxu0 %v1076
        %1176 = vmatprep.subr.mxu0 0.0
        %1177 = vmatpush1.msra.mxu0 %v1077
        %1178 = vmatprep.subr.mxu0 0.0
        %1179 = vmatpush1.msra.mxu0 %v1078
        %1180 = vmatprep.subr.mxu0 0.0
        %1181 = vmatpush1.msra.mxu0 %v1079
        %1182 = vmatprep.subr.mxu0 0.0
        %1183 = vmatpush1.msra.mxu0 %v1080
        %1184 = vmatprep.subr.mxu0 0.0
        %1185 = vmatpush1.msra.mxu0 %v1081
        %1186 = vmatprep.subr.mxu0 0.0
        %1187 = vmatpush1.msra.mxu0 %v1082
        %1188 = vmatprep.subr.mxu0 0.0
        %1189 = vmatpush1.msra.mxu0 %v1083
        %1190 = vmatprep.subr.mxu0 0.0
        %1191 = vmatpush1.msra.mxu0 %v1084
        %1192 = vmatprep.subr.mxu0 0.0
        %1193 = vmatpush1.msra.mxu0 %v1085
        %1194 = vmatprep.subr.mxu0 0.0
        %1195 = vmatpush1.msra.mxu0 %v1086
        %1196 = vmatprep.subr.mxu0 0.0
        %1197 = vmatpush1.msra.mxu0 0.0
        %1198 = vmatprep.subr.mxu0 0.0
        %1199 = vmatpush1.msra.mxu0 0.0
        %1200 = vmatprep.subr.mxu0 0.0
        %1201 = vmatpush1.msra.mxu0 0.0
        %1202 = vmatprep.subr.mxu0 0.0
        %1203 = vmatpush1.msra.mxu0 0.0
        %1204 = vmatprep.subr.mxu0 0.0
        %1205 = vmatpush1.msra.mxu0 0.0
        %1206 = vmatprep.subr.mxu0 0.0
        %1207 = vmatpush1.msra.mxu0 0.0
        %1208 = vmatprep.subr.mxu0 0.0
        %1209 = vmatpush1.msra.mxu0 0.0
        %1210 = vmatprep.subr.mxu0 0.0
        %1211 = vmatpush1.msra.mxu0 0.0
        %1212 = vmatprep.subr.mxu0 0.0
        %1213 = vmatpush1.msra.mxu0 0.0
        %1214 = vmatprep.subr.mxu0 0.0
        %1215 = vmatpush1.msra.mxu0 0.0
        %1216 = vmatprep.subr.mxu0 0.0
        %1217 = vmatpush1.msra.mxu0 0.0
        %1218 = vmatprep.subr.mxu0 0.0
        %1219 = vmatpush1.msra.mxu0 0.0
        %1220 = vmatprep.subr.mxu0 0.0
        %1221 = vmatpush1.msra.mxu0 0.0
        %1222 = vmatprep.subr.mxu0 0.0
        %1223 = vmatpush1.msra.mxu0 0.0
        %1224 = vmatprep.subr.mxu0 0.0
        %1225 = vmatpush1.msra.mxu0 0.0
        %1226 = vmatprep.subr.mxu0 0.0
        %1227 = vmatpush1.msra.mxu0 0.0
        %1228 = vmatprep.mubr.f32.mxu0 0.0
        %1229 = vmatmul.mubr.f32.gmra.mrb[0].mxu0 %v1037
        %v1230 = vpop.f32.mrb[0].mxu0
        %v1231 = vadd.f32 %v1161, %v1230
        %v1232 = vpop.f32.mrb[0].mxu0
        %1233 = vdwg.mxu0
        %v1234 = vmax.f32 %v1231, 0.0
        %v1236 = vrot.slane %v1234, 4
        %v1238 = vsel %vm1028, 0.0, %v1236
        %v1240 = vrot.slane %v1238, 2
        %v1241 = vrot.slane %v1236, 2
        %v1242 = vsel %vm520, %v1240, %v1241
        %v1244 = vrot.slane %v1238, 4
        %v1245 = vrot.slane %v1236, 4
        %v1246 = vsel %vm1028, %v1244, %v1245
        %v1248 = vld [vmem:[#allocation8] sm:$0xff]
        %v1249 = vld [vmem:[#allocation8 + $0x8] sm:$0xff]
        %v1250 = vld [vmem:[#allocation8 + $0x10] sm:$0xff]
        %v1251 = vld [vmem:[#allocation8 + $0x18] sm:$0xff]
        %v1252 = vld [vmem:[#allocation8 + $0x20] sm:$0xff]
        %v1253 = vld [vmem:[#allocation8 + $0x28] sm:$0xff]
        %v1254 = vld [vmem:[#allocation8 + $0x30] sm:$0xff]
        %v1255 = vld [vmem:[#allocation8 + $0x38] sm:$0xff]
        %v1256 = vld [vmem:[#allocation8 + $0x40] sm:$0xff]
        %v1257 = vld [vmem:[#allocation8 + $0x48] sm:$0xff]
        %v1258 = vld [vmem:[#allocation8 + $0x50] sm:$0xff]
        %v1259 = vld [vmem:[#allocation8 + $0x58] sm:$0xff]
        %v1260 = vld [vmem:[#allocation8 + $0x60] sm:$0xff]
        %v1261 = vld [vmem:[#allocation8 + $0x68] sm:$0xff]
        %v1262 = vld [vmem:[#allocation8 + $0x70] sm:$0xff]
        %v1263 = vld [vmem:[#allocation8 + $0x78] sm:$0xff]
        %v1264 = vld [vmem:[#allocation8 + $0x80] sm:$0xff]
        %v1265 = vld [vmem:[#allocation8 + $0x88] sm:$0xff]
        %v1266 = vld [vmem:[#allocation8 + $0x90] sm:$0xff]
        %v1267 = vld [vmem:[#allocation8 + $0x98] sm:$0xff]
        %v1268 = vld [vmem:[#allocation8 + $0xa0] sm:$0xff]
        %v1269 = vld [vmem:[#allocation8 + $0xa8] sm:$0xff]
        %v1270 = vld [vmem:[#allocation8 + $0xb0] sm:$0xff]
        %v1271 = vld [vmem:[#allocation8 + $0xb8] sm:$0xff]
        %v1272 = vld [vmem:[#allocation8 + $0xc0] sm:$0xff]
        %v1273 = vld [vmem:[#allocation8 + $0xc8] sm:$0xff]
        %v1274 = vld [vmem:[#allocation8 + $0xd0] sm:$0xff]
        %v1275 = vld [vmem:[#allocation8 + $0xd8] sm:$0xff]
        %v1276 = vld [vmem:[#allocation8 + $0xe0] sm:$0xff]
        %v1277 = vld [vmem:[#allocation8 + $0xe8] sm:$0xff]
        %v1278 = vld [vmem:[#allocation8 + $0xf0] sm:$0xff]
        %v1279 = vld [vmem:[#allocation8 + $0xf8] sm:$0xff]
        %v1280 = vld [vmem:[#allocation8 + $0x100] sm:$0xff]
        %v1281 = vld [vmem:[#allocation8 + $0x108] sm:$0xff]
        %v1282 = vld [vmem:[#allocation8 + $0x110] sm:$0xff]
        %v1283 = vld [vmem:[#allocation8 + $0x118] sm:$0xff]
        %v1284 = vld [vmem:[#allocation8 + $0x120] sm:$0xff]
        %v1285 = vld [vmem:[#allocation8 + $0x128] sm:$0xff]
        %v1286 = vld [vmem:[#allocation8 + $0x130] sm:$0xff]
        %v1287 = vld [vmem:[#allocation8 + $0x138] sm:$0xff]
        %v1288 = vld [vmem:[#allocation8 + $0x140] sm:$0xff]
        %v1289 = vld [vmem:[#allocation8 + $0x148] sm:$0xff]
        %v1290 = vld [vmem:[#allocation8 + $0x150] sm:$0xff]
        %v1291 = vld [vmem:[#allocation8 + $0x158] sm:$0xff]
        %v1292 = vld [vmem:[#allocation8 + $0x160] sm:$0xff]
        %v1293 = vld [vmem:[#allocation8 + $0x168] sm:$0xff]
        %v1294 = vld [vmem:[#allocation8 + $0x170] sm:$0xff]
        %v1295 = vld [vmem:[#allocation8 + $0x178] sm:$0xff]
        %v1296 = vld [vmem:[%s10] sm:$0x1]
        %v1298 = vlaneseq
        %v1299 = vshrl.u32 %v1298, 7
        %v1300 = vsub.s32 0, %v1299
        %v1301 = vrot.slane %v1296, %v1300
        %1303 = vmatprep.subr.mxu0 0.0
        %1304 = vmatpush1.msra.mxu0 %v1248
        %1305 = vmatprep.subr.mxu0 0.0
        %1306 = vmatpush1.msra.mxu0 %v1249
        %1307 = vmatprep.subr.mxu0 0.0
        %1308 = vmatpush1.msra.mxu0 %v1250
        %1309 = vmatprep.subr.mxu0 0.0
        %1310 = vmatpush1.msra.mxu0 %v1251
        %1311 = vmatprep.subr.mxu0 0.0
        %1312 = vmatpush1.msra.mxu0 %v1252
        %1313 = vmatprep.subr.mxu0 0.0
        %1314 = vmatpush1.msra.mxu0 %v1253
        %1315 = vmatprep.subr.mxu0 0.0
        %1316 = vmatpush1.msra.mxu0 %v1254
        %1317 = vmatprep.subr.mxu0 0.0
        %1318 = vmatpush1.msra.mxu0 %v1255
        %1319 = vmatprep.subr.mxu0 0.0
        %1320 = vmatpush1.msra.mxu0 %v1256
        %1321 = vmatprep.subr.mxu0 0.0
        %1322 = vmatpush1.msra.mxu0 %v1257
        %1323 = vmatprep.subr.mxu0 0.0
        %1324 = vmatpush1.msra.mxu0 %v1258
        %1325 = vmatprep.subr.mxu0 0.0
        %1326 = vmatpush1.msra.mxu0 %v1259
        %1327 = vmatprep.subr.mxu0 0.0
        %1328 = vmatpush1.msra.mxu0 %v1260
        %1329 = vmatprep.subr.mxu0 0.0
        %1330 = vmatpush1.msra.mxu0 %v1261
        %1331 = vmatprep.subr.mxu0 0.0
        %1332 = vmatpush1.msra.mxu0 %v1262
        %1333 = vmatprep.subr.mxu0 0.0
        %1334 = vmatpush1.msra.mxu0 %v1263
        %1335 = vmatprep.subr.mxu0 0.0
        %1336 = vmatpush1.msra.mxu0 %v1264
        %1337 = vmatprep.subr.mxu0 0.0
        %1338 = vmatpush1.msra.mxu0 %v1265
        %1339 = vmatprep.subr.mxu0 0.0
        %1340 = vmatpush1.msra.mxu0 %v1266
        %1341 = vmatprep.subr.mxu0 0.0
        %1342 = vmatpush1.msra.mxu0 %v1267
        %1343 = vmatprep.subr.mxu0 0.0
        %1344 = vmatpush1.msra.mxu0 %v1268
        %1345 = vmatprep.subr.mxu0 0.0
        %1346 = vmatpush1.msra.mxu0 %v1269
        %1347 = vmatprep.subr.mxu0 0.0
        %1348 = vmatpush1.msra.mxu0 %v1270
        %1349 = vmatprep.subr.mxu0 0.0
        %1350 = vmatpush1.msra.mxu0 %v1271
        %1351 = vmatprep.subr.mxu0 0.0
        %1352 = vmatpush1.msra.mxu0 %v1272
        %1353 = vmatprep.subr.mxu0 0.0
        %1354 = vmatpush1.msra.mxu0 %v1273
        %1355 = vmatprep.subr.mxu0 0.0
        %1356 = vmatpush1.msra.mxu0 %v1274
        %1357 = vmatprep.subr.mxu0 0.0
        %1358 = vmatpush1.msra.mxu0 %v1275
        %1359 = vmatprep.subr.mxu0 0.0
        %1360 = vmatpush1.msra.mxu0 %v1276
        %1361 = vmatprep.subr.mxu0 0.0
        %1362 = vmatpush1.msra.mxu0 %v1277
        %1363 = vmatprep.subr.mxu0 0.0
        %1364 = vmatpush1.msra.mxu0 %v1278
        %1365 = vmatprep.subr.mxu0 0.0
        %1366 = vmatpush1.msra.mxu0 %v1279
        %1367 = vmatprep.mubr.f32.mxu0 %v1242
        %1368 = vmatmul.mubr.f32.gmra.mrb[0].mxu0 %v1238
        %v1369 = vpop.f32.mrb[0].mxu0
        %v1370 = vadd.f32 %v1301, %v1369
        %v1371 = vpop.f32.mrb[0].mxu0
        %1372 = vdwg.mxu0
        %1373 = vmatprep.subr.mxu0 0.0
        %1374 = vmatpush1.msra.mxu0 %v1280
        %1375 = vmatprep.subr.mxu0 0.0
        %1376 = vmatpush1.msra.mxu0 %v1281
        %1377 = vmatprep.subr.mxu0 0.0
        %1378 = vmatpush1.msra.mxu0 %v1282
        %1379 = vmatprep.subr.mxu0 0.0
        %1380 = vmatpush1.msra.mxu0 %v1283
        %1381 = vmatprep.subr.mxu0 0.0
        %1382 = vmatpush1.msra.mxu0 %v1284
        %1383 = vmatprep.subr.mxu0 0.0
        %1384 = vmatpush1.msra.mxu0 %v1285
        %1385 = vmatprep.subr.mxu0 0.0
        %1386 = vmatpush1.msra.mxu0 %v1286
        %1387 = vmatprep.subr.mxu0 0.0
        %1388 = vmatpush1.msra.mxu0 %v1287
        %1389 = vmatprep.subr.mxu0 0.0
        %1390 = vmatpush1.msra.mxu0 %v1288
        %1391 = vmatprep.subr.mxu0 0.0
        %1392 = vmatpush1.msra.mxu0 %v1289
        %1393 = vmatprep.subr.mxu0 0.0
        %1394 = vmatpush1.msra.mxu0 %v1290
        %1395 = vmatprep.subr.mxu0 0.0
        %1396 = vmatpush1.msra.mxu0 %v1291
        %1397 = vmatprep.subr.mxu0 0.0
        %1398 = vmatpush1.msra.mxu0 %v1292
        %1399 = vmatprep.subr.mxu0 0.0
        %1400 = vmatpush1.msra.mxu0 %v1293
        %1401 = vmatprep.subr.mxu0 0.0
        %1402 = vmatpush1.msra.mxu0 %v1294
        %1403 = vmatprep.subr.mxu0 0.0
        %1404 = vmatpush1.msra.mxu0 %v1295
        %1405 = vmatprep.subr.mxu0 0.0
        %1406 = vmatpush1.msra.mxu0 0.0
        %1407 = vmatprep.subr.mxu0 0.0
        %1408 = vmatpush1.msra.mxu0 0.0
        %1409 = vmatprep.subr.mxu0 0.0
        %1410 = vmatpush1.msra.mxu0 0.0
        %1411 = vmatprep.subr.mxu0 0.0
        %1412 = vmatpush1.msra.mxu0 0.0
        %1413 = vmatprep.subr.mxu0 0.0
        %1414 = vmatpush1.msra.mxu0 0.0
        %1415 = vmatprep.subr.mxu0 0.0
        %1416 = vmatpush1.msra.mxu0 0.0
        %1417 = vmatprep.subr.mxu0 0.0
        %1418 = vmatpush1.msra.mxu0 0.0
        %1419 = vmatprep.subr.mxu0 0.0
        %1420 = vmatpush1.msra.mxu0 0.0
        %1421 = vmatprep.subr.mxu0 0.0
        %1422 = vmatpush1.msra.mxu0 0.0
        %1423 = vmatprep.subr.mxu0 0.0
        %1424 = vmatpush1.msra.mxu0 0.0
        %1425 = vmatprep.subr.mxu0 0.0
        %1426 = vmatpush1.msra.mxu0 0.0
        %1427 = vmatprep.subr.mxu0 0.0
        %1428 = vmatpush1.msra.mxu0 0.0
        %1429 = vmatprep.subr.mxu0 0.0
        %1430 = vmatpush1.msra.mxu0 0.0
        %1431 = vmatprep.subr.mxu0 0.0
        %1432 = vmatpush1.msra.mxu0 0.0
        %1433 = vmatprep.subr.mxu0 0.0
        %1434 = vmatpush1.msra.mxu0 0.0
        %1435 = vmatprep.subr.mxu0 0.0
        %1436 = vmatpush1.msra.mxu0 0.0
        %1437 = vmatprep.mubr.f32.mxu0 0.0
        %1438 = vmatmul.mubr.f32.gmra.mrb[0].mxu0 %v1246
        %v1439 = vpop.f32.mrb[0].mxu0
        %v1440 = vadd.f32 %v1370, %v1439
        %v1441 = vpop.f32.mrb[0].mxu0
        %1442 = vdwg.mxu0
        %v1443 = vmax.f32 %v1440, 0.0
        %v1444 = vadd.f32 %v1443, %v1024
        %v1445 = vmax.f32 %v1444, 0.0
        %v1446 = vld [vmem:[#allocation10] sm:$0xff]
        %v1447 = vld [vmem:[#allocation10 + $0x8] sm:$0xff]
        %v1448 = vld [vmem:[#allocation10 + $0x10] sm:$0xff]
        %v1449 = vld [vmem:[#allocation10 + $0x18] sm:$0xff]
        %v1450 = vld [vmem:[#allocation10 + $0x20] sm:$0xff]
        %v1451 = vld [vmem:[#allocation10 + $0x28] sm:$0xff]
        %v1452 = vld [vmem:[#allocation10 + $0x30] sm:$0xff]
        %v1453 = vld [vmem:[#allocation10 + $0x38] sm:$0xff]
        %v1454 = vld [vmem:[#allocation10 + $0x40] sm:$0xff]
        %v1455 = vld [vmem:[#allocation10 + $0x48] sm:$0xff]
        %v1456 = vld [vmem:[#allocation10 + $0x50] sm:$0xff]
        %v1457 = vld [vmem:[#allocation10 + $0x58] sm:$0xff]
        %v1458 = vld [vmem:[#allocation10 + $0x60] sm:$0xff]
        %v1459 = vld [vmem:[#allocation10 + $0x68] sm:$0xff]
        %v1460 = vld [vmem:[#allocation10 + $0x70] sm:$0xff]
        %v1461 = vld [vmem:[#allocation10 + $0x78] sm:$0xff]
        %v1462 = vld [vmem:[%s12] sm:$0x1]
        %v1464 = vrot.slane %v1445, 7
        %1466 = vmatprep.subr.mxu0 0.0
        %1467 = vmatpush1.msra.mxu0 %v1446
        %1468 = vmatprep.subr.mxu0 0.0
        %1469 = vmatpush1.msra.mxu0 %v1447
        %1470 = vmatprep.subr.mxu0 0.0
        %1471 = vmatpush1.msra.mxu0 %v1448
        %1472 = vmatprep.subr.mxu0 0.0
        %1473 = vmatpush1.msra.mxu0 %v1449
        %1474 = vmatprep.subr.mxu0 0.0
        %1475 = vmatpush1.msra.mxu0 %v1450
        %1476 = vmatprep.subr.mxu0 0.0
        %1477 = vmatpush1.msra.mxu0 %v1451
        %1478 = vmatprep.subr.mxu0 0.0
        %1479 = vmatpush1.msra.mxu0 %v1452
        %1480 = vmatprep.subr.mxu0 0.0
        %1481 = vmatpush1.msra.mxu0 %v1453
        %1482 = vmatprep.subr.mxu0 0.0
        %1483 = vmatpush1.msra.mxu0 %v1454
        %1484 = vmatprep.subr.mxu0 0.0
        %1485 = vmatpush1.msra.mxu0 %v1455
        %1486 = vmatprep.subr.mxu0 0.0
        %1487 = vmatpush1.msra.mxu0 %v1456
        %1488 = vmatprep.subr.mxu0 0.0
        %1489 = vmatpush1.msra.mxu0 %v1457
        %1490 = vmatprep.subr.mxu0 0.0
        %1491 = vmatpush1.msra.mxu0 %v1458
        %1492 = vmatprep.subr.mxu0 0.0
        %1493 = vmatpush1.msra.mxu0 %v1459
        %1494 = vmatprep.subr.mxu0 0.0
        %1495 = vmatpush1.msra.mxu0 %v1460
        %1496 = vmatprep.subr.mxu0 0.0
        %1497 = vmatpush1.msra.mxu0 %v1461
        %1498 = vmatprep.subr.mxu0 0.0
        %1499 = vmatpush1.msra.mxu0 0.0
        %1500 = vmatprep.subr.mxu0 0.0
        %1501 = vmatpush1.msra.mxu0 0.0
        %1502 = vmatprep.subr.mxu0 0.0
        %1503 = vmatpush1.msra.mxu0 0.0
        %1504 = vmatprep.subr.mxu0 0.0
        %1505 = vmatpush1.msra.mxu0 0.0
        %1506 = vmatprep.subr.mxu0 0.0
        %1507 = vmatpush1.msra.mxu0 0.0
        %1508 = vmatprep.subr.mxu0 0.0
        %1509 = vmatpush1.msra.mxu0 0.0
        %1510 = vmatprep.subr.mxu0 0.0
        %1511 = vmatpush1.msra.mxu0 0.0
        %1512 = vmatprep.subr.mxu0 0.0
        %1513 = vmatpush1.msra.mxu0 0.0
        %1514 = vmatprep.subr.mxu0 0.0
        %1515 = vmatpush1.msra.mxu0 0.0
        %1516 = vmatprep.subr.mxu0 0.0
        %1517 = vmatpush1.msra.mxu0 0.0
        %1518 = vmatprep.subr.mxu0 0.0
        %1519 = vmatpush1.msra.mxu0 0.0
        %1520 = vmatprep.subr.mxu0 0.0
        %1521 = vmatpush1.msra.mxu0 0.0
        %1522 = vmatprep.subr.mxu0 0.0
        %1523 = vmatpush1.msra.mxu0 0.0
        %1524 = vmatprep.subr.mxu0 0.0
        %1525 = vmatpush1.msra.mxu0 0.0
        %1526 = vmatprep.subr.mxu0 0.0
        %1527 = vmatpush1.msra.mxu0 0.0
        %1528 = vmatprep.subr.mxu0 0.0
        %1529 = vmatpush1.msra.mxu0 0.0
        %1530 = vmatprep.mubr.f32.mxu0 0.0
        %1531 = vmatmul.mubr.f32.gmra.mrb[0].mxu0 %v1464
        %v1532 = vpop.f32.mrb[0].mxu0
        %v1533 = vadd.f32 %v1462, %v1532
        %v1534 = vpop.f32.mrb[0].mxu0
        %1535 = vdwg.mxu0
        %1536 = vst [vmem:[%s503] sm:$0x1] %v1533
        %s1537 = sand.u32 %s316, 1
        %s1538 = scalar_lea.sflag [#allocation4], %s1537
        %s1539 = sand.u32 %s316, 1
        %s1540 = scalar_lea.vmem [#allocation11], %s1539
        // Predicated region
        $region93: #{tcn_forward.1} parent=71 // pred_check
          %p1541 = pneg %p326
        $region94: #{tcn_forward.1} parent=71 // pred_check_branch
          %1543 = sbr.rel (%p1541) target = $region96
        $region95: #{tcn_forward.1} parent=71 // pred_region
          %s1545 = ssub.s32 16, 16
          %1546 = vsyncadd %s1538, %s1545
          %s1547 = smul.addr %s30, 16
          %s1548 = scalar_lea.hbm %s13, %s1547
          %s1550 = sshll.u32 %s1540, 4
          %s1551 = int_to_ptr.vmem [resolvable:$true] %s1550
          %1553 = dma.vmem_to_hbm [thread:$0]  %s1551, 16, %s1548, %s1538
        $region96: #{tcn_forward.1} parent=71 // pred_fallthru
          _
      $region72: #{tcn_forward.1} parent=5 // pred_fallthru
        _
      %p1554 = scmp.le.s32.totalorder 2, %s25
      // Predicated region
      $region97: #{tcn_forward.1} parent=5 // pred_check
        %p1555 = pneg %p1554
      $region98: #{tcn_forward.1} parent=5 // pred_check_branch
        %1557 = sbr.rel (%p1555) target = $region100
      $region99: #{tcn_forward.1} parent=5 // pred_region
        %s1558 = ssub.s32 %s25, 2
        // Predicated region
        $region101: #{tcn_forward.1} parent=99 // pred_check
          %p1559 = pneg %p332
        $region102: #{tcn_forward.1} parent=99 // pred_check_branch
          %1561 = sbr.rel (%p1559) target = $region104
        $region103: #{tcn_forward.1} parent=99 // pred_region
          %s1562 = sand.u32 %s317, 1
          %s1563 = scalar_lea.sflag [#allocation4], %s1562
          %s1564 = sand.u32 %s317, 1
          %s1565 = scalar_lea.vmem [#allocation11], %s1564
          %1566 = dma.done %s1563, 16
        $region104: #{tcn_forward.1} parent=99 // pred_fallthru
          _
      $region100: #{tcn_forward.1} parent=5 // pred_fallthru
        _
    $region6: #{tcn_forward.1} parent=1 // loop_footer
      %s29 = sadd.s32 1, %s25
    $region7: #{tcn_forward.1} parent=1 // loop_footer_branch
      %24 = sbr.rel target = $region3
    $region8: #{tcn_forward.1} parent=1 // loop_exit
      _
    %1567 = vsyncpa [#allocation3], 1
    %s1568 = scalar_lea.sflag [#allocation3], 1
    %1569 = vsyncpa %s1568, 1
    %1570 = vsyncpa [#allocation6], 1
    %1571 = vsyncpa [#allocation9], 1
    %1572 = vsyncpa [#allocation4], 1
    %s1573 = scalar_lea.sflag [#allocation4], 1
    %1574 = vsyncpa %s1573, 1

</llo_original>
